<compile_context>
chip_gen: v5e
topology: v5e:2x2
jax: 0.10.0
libtpu: 0.0.40
codegen_flags: <defaults>
</compile_context>

<pallas_src>
import numpy as np
import jax
import jax.numpy as jnp
from jax.experimental import pallas as pl
from jax.experimental.pallas import tpu as pltpu


def _round_up(x, m):
    return ((x + m - 1) // m) * m


def _physical_vmem_bytes():
    """Physical VMEM of the attached chip; conservative (v7x per-TC) fallback."""
    try:
        info = pltpu.get_tpu_info()
        v = getattr(info, "vmem_capacity_bytes", None)
        if v:
            return int(v)
    except Exception:
        pass
    return 64 << 20


def _vmem_estimate(tile_nn, n_pad, e_pad, state_bytes, n_state_outs, w_bytes_per_el,
                   param_bufs):
    """Per-grid-step VMEM working set (bytes), including in-kernel temporaries."""
    blk = tile_nn * n_pad * 4
    resident = 5 * blk * param_bufs                                  # decayed traces, attn, exp(latent_*)
    w = (n_pad * e_pad * w_bytes_per_el + e_pad * 4) * param_bufs    # W + bias
    spikes = 2 * (n_pad + tile_nn) * 4                               # double-buffered spike row/col
    outs = 2 * (n_state_outs * tile_nn * n_pad * state_bytes + tile_nn * e_pad * 4)
    temps = 3 * blk + tile_nn * e_pad * 4                            # attn f32, selects, matmul-dtype copy, matmul out
    return resident + w + spikes + outs + temps


def _pick_tile_nn(nn, n_pad, e_pad, state_bytes, n_state_outs, w_bytes_per_el, vmem_cap):
    """Largest row tile whose (double-buffered, worst case) working set fits the budget."""
    if nn <= 256:
        cands = [_round_up(nn, 8)]
    else:
        cands = list(range(_round_up(nn, 256), 255, -256))   # 256-aligned M keeps MXU happy
    cands += list(range(248, 7, -8))                          # sub-256 last resort
    for t in cands:
        if _vmem_estimate(t, n_pad, e_pad, state_bytes, n_state_outs,
                          w_bytes_per_el, 2) <= vmem_cap:
            return t
    # TODO(synk): add an N-split grid axis (innermost 'arbitrary') with a (tile_nn, E_p) f32
    # accumulator + pl.when init/finalize so very large n_total_neurons fits 64 MiB VMEM.
    raise ValueError("HebbianAttention working set exceeds the VMEM budget even at tile_nn=8; "
                     "an N-split kernel variant is required for this n_total_neurons.")


def _hebbian_kernel(matmul_dtype, emit_state):
    def kernel(pre_s_ref, post_s_ref, dpre_ref, dpost_ref, attn_ref,
               exp_lpre_ref, exp_lpost_ref, w_ref, b_ref, *out_refs):
        pre_row = pre_s_ref[0]       # (1, N_p)      -- broadcasts over sublanes
        post_col = post_s_ref[0]     # (tile_nn, 1)  -- broadcasts over lanes

        # trace * (1 - dt*exp(-tau)) was hoisted to the wrapper ("decayed traces");
        # only the spike contribution is added here (pure VPU).
        new_pre = dpre_ref[...] + pre_row * exp_lpre_ref[...]
        new_post = dpost_ref[...] + post_col * exp_lpost_ref[...]

        attn = (attn_ref[...]
                + jnp.where(post_col != 0.0, new_pre, 0.0)
                - jnp.where(pre_row != 0.0, new_post, 0.0))

        # MXU matmul, f32 accumulation; 1/sqrt(N+E) already folded into W and bias.
        out = jnp.dot(attn.astype(matmul_dtype), w_ref[...],
                      preferred_element_type=jnp.float32)

        if emit_state:
            out_ref, new_pre_ref, new_post_ref, new_attn_ref = out_refs
            new_pre_ref[0] = new_pre.astype(new_pre_ref.dtype)
            new_post_ref[0] = new_post.astype(new_post_ref.dtype)
            new_attn_ref[0] = attn.astype(new_attn_ref.dtype)
        else:
            (out_ref,) = out_refs
        out_ref[0] = out + b_ref[...]
    return kernel


def make_hebbian_attention(neurons, latent_pre_w, latent_post_w, pre_tau_s, post_tau_s,
                           w_proj, b_proj, *, dt=1.0,
                           state_dtype=jnp.float32, matmul_dtype=jnp.bfloat16):
    """Build a forward fn for HebbianAttentionLayer (data_type='ephys').

    Static parameters are pre-processed / padded exactly once here (not per call).

    forward(spikes, pre_trace, post_trace, attention, return_state=True, return_padded=False)
      -> out [B, Nn, E] (and, if return_state, new_pre/new_post/new_attention [B, Nn, N]).
    """
    neurons = np.asarray(neurons)
    Nn = int(neurons.shape[0])
    N, E = int(w_proj.shape[0]), int(w_proj.shape[1])
    scale = np.float32(1.0 / np.sqrt(N + E))
    dt = np.float32(dt)

    lpre = jnp.asarray(latent_pre_w, jnp.float32).reshape(Nn, N)
    lpost = jnp.asarray(latent_post_w, jnp.float32).reshape(Nn, N)
    pre_tau = jnp.asarray(pre_tau_s, jnp.float32).reshape(Nn, N)
    post_tau = jnp.asarray(post_tau_s, jnp.float32).reshape(Nn, N)

    # Batch-invariant transcendentals, computed once (never inside the kernel / grid loop).
    pre_decay = 1.0 - dt * jnp.exp(-pre_tau)       # == 1 - dt / exp(pre_tau_s)
    post_decay = 1.0 - dt * jnp.exp(-post_tau)

    # Lane-dense padding targets.
    N_p = _round_up(N, 128)
    E_p = _round_up(E, 128)

    state_bytes = np.dtype(state_dtype).itemsize
    w_bytes = np.dtype(matmul_dtype).itemsize

    # VMEM budget from the chip (v7x 64 MiB/TC, v5e/v6e 128 MiB), ~16% headroom for Mosaic
    # internal scratch; tile_nn = largest tile that fits (explicit error, no silent min()).
    phys_vmem = _physical_vmem_bytes()
    vmem_cap = (int(phys_vmem * 0.84) // 1024) * 1024
    tile_nn = _pick_tile_nn(Nn, N_p, E_p, state_bytes, 3, w_bytes, vmem_cap)
    Nn_p = _round_up(Nn, tile_nn)
    num_nn_tiles = Nn_p // tile_nn
    assert _vmem_estimate(tile_nn, N_p, E_p, state_bytes, 3, w_bytes, 2) <= vmem_cap

    def pad2(x):
        if Nn_p == Nn and N_p == N:
            return x
        return jnp.pad(x, ((0, Nn_p - Nn), (0, N_p - N)))

    # Static, padded-once kernel operands.
    exp_lpre_p = pad2(jnp.exp(lpre))
    exp_lpost_p = pad2(jnp.exp(lpost))
    w_p = jnp.pad(jnp.asarray(w_proj, jnp.float32) * scale,
                  ((0, N_p - N), (0, E_p - E))).astype(matmul_dtype)
    b_p = jnp.pad(jnp.asarray(b_proj, jnp.float32).reshape(1, E) * scale,
                  ((0, 0), (0, E_p - E)))

    identity_neurons = (Nn == N) and np.array_equal(neurons, np.arange(N))
    neurons_dev = None if identity_neurons else jnp.asarray(neurons, jnp.int32)

    # BlockSpecs. Grid = (row tile j, batch b); batch innermost keeps param blocks resident.
    def in_specs(single_buffer):
        kw = {"pipeline_mode": pl.Buffered(1)} if single_buffer else {}
        param = pl.BlockSpec((tile_nn, N_p), lambda j, b: (j, 0), **kw)
        w_spec = pl.BlockSpec((N_p, E_p), lambda j, b: (0, 0), **kw)
        bias_spec = pl.BlockSpec((1, E_p), lambda j, b: (0, 0), **kw)
        return [
            pl.BlockSpec((1, 1, N_p), lambda j, b: (b, 0, 0)),        # pre spikes (row)
            pl.BlockSpec((1, tile_nn, 1), lambda j, b: (b, j, 0)),    # post spikes (col)
            param, param, param,                                      # decayed pre/post trace, attention
            param, param,                                             # exp(latent_pre/post_w)
            w_spec, bias_spec,                                        # scaled W (matmul dtype) + bias
        ]

    out_spec = pl.BlockSpec((1, tile_nn, E_p), lambda j, b: (b, j, 0))
    state_spec = pl.BlockSpec((1, tile_nn, N_p), lambda j, b: (b, j, 0))

    # Megacore / v7x 2-TC split: prefer splitting row tiles (params fetched once per core);
    # only split batch when there is a single row tile.
    dim_sem = ("parallel", "arbitrary") if num_nn_tiles >= 2 else ("parallel", "parallel")

    kernels = {True: _hebbian_kernel(matmul_dtype, True),
               False: _hebbian_kernel(matmul_dtype, False)}
    buffered_ok = {"value": None}   # lazily probed pl.Buffered(1) support

    def forward(spikes, pre_trace, post_trace, attention, *,
                return_state=True, return_padded=False):
        spikes_f = jnp.asarray(spikes, jnp.float32)
        B = int(spikes_f.shape[0])

        # Hoisted batch-invariant trace decay (one fused elementwise op per call).
        dpre_p = pad2(jnp.asarray(pre_trace, jnp.float32).reshape(Nn, N) * pre_decay)
        dpost_p = pad2(jnp.asarray(post_trace, jnp.float32).reshape(Nn, N) * post_decay)
        attn_p = pad2(jnp.asarray(attention, jnp.float32).reshape(Nn, N))

        pre_spk = spikes_f if N_p == N else jnp.pad(spikes_f, ((0, 0), (0, N_p - N)))
        pre_spk = pre_spk.reshape(B, 1, N_p)
        post_g = spikes_f if identity_neurons else spikes_f[:, neurons_dev]
        post_spk = post_g if Nn_p == Nn else jnp.pad(post_g, ((0, 0), (0, Nn_p - Nn)))
        post_spk = post_spk.reshape(B, Nn_p, 1)

        n_state = 3 if return_state else 0
        out_shapes = ((jax.ShapeDtypeStruct((B, Nn_p, E_p), jnp.float32),)
                      + (jax.ShapeDtypeStruct((B, Nn_p, N_p), state_dtype),) * n_state)
        out_specs = [out_spec] + [state_spec] * n_state

        # Advisory cost: this call is dominated by the state HBM writeback.
        flops = 2 * B * Nn_p * N_p * E_p + 6 * B * Nn_p * N_p
        bytes_acc = (num_nn_tiles * 5 * tile_nn * N_p * 4
                     + N_p * E_p * w_bytes + E_p * 4
                     + B * (N_p + Nn_p) * 4
                     + B * Nn_p * (n_state * N_p * state_bytes + E_p * 4))
        cost = pl.CostEstimate(flops=int(flops), transcendentals=0,
                               bytes_accessed=int(bytes_acc))

        args = (pre_spk, post_spk, dpre_p, dpost_p, attn_p,
                exp_lpre_p, exp_lpost_p, w_p, b_p)

        def call(single_buffer):
            grid_spec = pltpu.PrefetchScalarGridSpec(
                num_scalar_prefetch=0,
                grid=(num_nn_tiles, B),
                in_specs=in_specs(single_buffer),
                out_specs=out_specs)
            res = pl.pallas_call(
                kernels[return_state],
                out_shape=out_shapes,
                grid_spec=grid_spec,
                compiler_params=pltpu.CompilerParams(
                    dimension_semantics=dim_sem,
                    vmem_limit_bytes=vmem_cap),
                cost_estimate=cost,
            )(*args)
            return res if isinstance(res, (tuple, list)) else (res,)

        if buffered_ok["value"] is True:
            res = call(True)
        elif buffered_ok["value"] is False:
            res = call(False)
        else:
            try:
                res = call(True)
                jax.block_until_ready(res)
                buffered_ok["value"] = True
            except Exception:   # pl.Buffered(1) rejected by this JAX/Mosaic version
                buffered_ok["value"] = False
                res = call(False)

        if return_padded:
            # NOTE: rows >= Nn of `out` contain the bias (not zero); padded state is zero.
            return tuple(res) if return_state else res[0]

        out = res[0] if (Nn_p == Nn and E_p == E) else res[0][:, :Nn, :E]
        if not return_state:
            return out
        if Nn_p == Nn and N_p == N:
            return out, res[1], res[2], res[3]
        return (out, res[1][:, :Nn, :N], res[2][:, :Nn, :N], res[3][:, :Nn, :N])

    return forward


def _reference(spikes, neurons, pre_trace, post_trace, attention,
               lpre, lpost, pre_tau, post_tau, w, b, dt, N, E):
    spikes = np.asarray(spikes, np.float32)
    pre_s = spikes[:, None, :]
    post_s = spikes[:, neurons][:, :, None]
    npre = pre_trace[None] * (1 - dt / np.exp(pre_tau[None])) + pre_s * np.exp(lpre[None])
    npost = post_trace[None] * (1 - dt / np.exp(post_tau[None])) + post_s * np.exp(lpost[None])
    attn = attention[None] + npre * (post_s != 0) - npost * (pre_s != 0)
    out = (attn @ np.asarray(w) + np.asarray(b)) / np.sqrt(N + E)
    return out, npre, npost, attn


if __name__ == "__main__":
    # Small shapes consistent with the module: n_total_neurons=32, embed_dim=32, batch=2.
    N = 32          # n_total_neurons
    E = 32          # embed_dim
    B = 2           # batch
    tau_s = 0.5
    dt = 1.0
    w_pre, w_post = 1.0, 0.5
    neurons = np.arange(N)
    Nn = len(neurons)

    key = jax.random.PRNGKey(0)
    k_spk, k_lpre, k_lpost, k_w, k_b = jax.random.split(key, 5)

    # Deterministic parameter init (mirrors __init__ distributions, synthetic values).
    std = 1.0 / np.sqrt(Nn + N)
    latent_pre_w = np.log(w_pre) + std * jax.random.normal(k_lpre, (Nn, N), jnp.float32)
    latent_post_w = np.log(w_post) + std * jax.random.normal(k_lpost, (Nn, N), jnp.float32)
    pre_tau = jnp.full((Nn, N), np.log(tau_s), jnp.float32)
    post_tau = jnp.full((Nn, N), np.log(tau_s), jnp.float32)

    lin_bound = 1.0 / np.sqrt(N)
    w_proj = jax.random.uniform(k_w, (N, E), jnp.float32, -lin_bound, lin_bound)  # [N, E] = PyTorch W.T
    b_proj = jax.random.uniform(k_b, (1, E), jnp.float32, -lin_bound, lin_bound)

    # Fresh-module state: zero traces and attention buffers.
    pre_trace0 = jnp.zeros((Nn, N), jnp.float32)
    post_trace0 = jnp.zeros((Nn, N), jnp.float32)
    attention0 = jnp.zeros((Nn, N), jnp.float32)

    # Binary spikes [B, N].
    spikes = jax.random.bernoulli(k_spk, 0.3, (B, N)).astype(jnp.float32)

    # Pure-numpy reference.
    ref_out, ref_pre, ref_post, ref_attn = _reference(
        np.asarray(spikes), neurons, np.asarray(pre_trace0), np.asarray(post_trace0),
        np.asarray(attention0), np.asarray(latent_pre_w), np.asarray(latent_post_w),
        np.asarray(pre_tau), np.asarray(post_tau), np.asarray(w_proj), np.asarray(b_proj),
        dt, N, E)

    # (1) Default path: f32 state outputs = exact module semantics.
    fwd = make_hebbian_attention(neurons, latent_pre_w, latent_post_w, pre_tau, post_tau,
                                 w_proj, b_proj, dt=dt)
    out, new_pre, new_post, new_attn = fwd(spikes, pre_trace0, post_trace0, attention0)
    jax.block_until_ready((out, new_pre, new_post, new_attn))

    # State path is pure f32 -> tight check; projection uses bf16 MXU inputs -> loose check.
    np.testing.assert_allclose(np.asarray(new_pre), ref_pre, rtol=1e-5, atol=1e-5)
    np.testing.assert_allclose(np.asarray(new_post), ref_post, rtol=1e-5, atol=1e-5)
    np.testing.assert_allclose(np.asarray(new_attn), ref_attn, rtol=1e-5, atol=1e-5)
    np.testing.assert_allclose(np.asarray(out), ref_out, rtol=2e-2, atol=2e-2)

    # (2) Projection-only fast path (no state writeback at all).
    out_only = fwd(spikes, pre_trace0, post_trace0, attention0, return_state=False)
    jax.block_until_ready(out_only)
    np.testing.assert_allclose(np.asarray(out_only), ref_out, rtol=2e-2, atol=2e-2)

    # (3) bf16 state writeback (halves the dominant HBM write traffic; compute stays f32).
    fwd_bf16 = make_hebbian_attention(neurons, latent_pre_w, latent_post_w, pre_tau,
                                      post_tau, w_proj, b_proj, dt=dt,
                                      state_dtype=jnp.bfloat16)
    out2, pre2, post2, attn2 = fwd_bf16(spikes, pre_trace0, post_trace0, attention0)
    jax.block_until_ready((out2, pre2, post2, attn2))
    np.testing.assert_allclose(np.asarray(pre2.astype(jnp.float32)), ref_pre,
                               rtol=2e-2, atol=2e-2)
    np.testing.assert_allclose(np.asarray(attn2.astype(jnp.float32)), ref_attn,
                               rtol=2e-2, atol=2e-2)
    np.testing.assert_allclose(np.asarray(out2), ref_out, rtol=2e-2, atol=2e-2)

    print("KERNEL_OK")
</pallas_src>

<mosaic_0001>
module attributes {stable_mosaic.version = 11 : i64} {
  func.func @kernel(%arg0: i32, %arg1: i32, %arg2: memref<1x1x128xf32, #tpu.memory_space<vmem>>, %arg3: memref<1x32x1xf32, #tpu.memory_space<vmem>>, %arg4: memref<32x128xf32, #tpu.memory_space<vmem>>, %arg5: memref<32x128xf32, #tpu.memory_space<vmem>>, %arg6: memref<32x128xf32, #tpu.memory_space<vmem>>, %arg7: memref<32x128xf32, #tpu.memory_space<vmem>>, %arg8: memref<32x128xf32, #tpu.memory_space<vmem>>, %arg9: memref<128x128xbf16, #tpu.memory_space<vmem>>, %arg10: memref<1x128xf32, #tpu.memory_space<vmem>>, %arg11: memref<1x32x128xf32, #tpu.memory_space<vmem>>, %arg12: memref<1x32x128xf32, #tpu.memory_space<vmem>>, %arg13: memref<1x32x128xf32, #tpu.memory_space<vmem>>, %arg14: memref<1x32x128xf32, #tpu.memory_space<vmem>>) attributes {dimension_semantics = [#tpu.dimension_semantics<parallel>, #tpu.dimension_semantics<parallel>], iteration_bounds = array<i64: 1, 2>, scalar_prefetch = 0 : i64, scratch_operands = 0 : i64, tpu.core_type = #tpu.core_type<tc>, window_params = [{transform_indices = @transform_0, window_bounds = array<i64: 1, 1, 128>}, {transform_indices = @transform_1, window_bounds = array<i64: 1, 32, 1>}, {pipeline_mode = #tpu.pipeline_mode<synchronous>, transform_indices = @transform_2, window_bounds = array<i64: 32, 128>}, {pipeline_mode = #tpu.pipeline_mode<synchronous>, transform_indices = @transform_3, window_bounds = array<i64: 32, 128>}, {pipeline_mode = #tpu.pipeline_mode<synchronous>, transform_indices = @transform_4, window_bounds = array<i64: 32, 128>}, {pipeline_mode = #tpu.pipeline_mode<synchronous>, transform_indices = @transform_5, window_bounds = array<i64: 32, 128>}, {pipeline_mode = #tpu.pipeline_mode<synchronous>, transform_indices = @transform_6, window_bounds = array<i64: 32, 128>}, {pipeline_mode = #tpu.pipeline_mode<synchronous>, transform_indices = @transform_7, window_bounds = array<i64: 128, 128>}, {pipeline_mode = #tpu.pipeline_mode<synchronous>, transform_indices = @transform_8, window_bounds = array<i64: 1, 128>}, {transform_indices = @transform_9, window_bounds = array<i64: 1, 32, 128>}, {transform_indices = @transform_10, window_bounds = array<i64: 1, 32, 128>}, {transform_indices = @transform_11, window_bounds = array<i64: 1, 32, 128>}, {transform_indices = @transform_12, window_bounds = array<i64: 1, 32, 128>}]} {
    %c0 = arith.constant 0 : index
    %c0_0 = arith.constant 0 : index
    %c0_1 = arith.constant 0 : index
    %0 = vector.load %arg2[%c0, %c0_0, %c0_1] : memref<1x1x128xf32, #tpu.memory_space<vmem>>, vector<1x1x128xf32>
    %1 = vector.shape_cast %0 : vector<1x1x128xf32> to vector<1x128xf32>
    %c0_2 = arith.constant 0 : index
    %c0_3 = arith.constant 0 : index
    %c0_4 = arith.constant 0 : index
    %2 = vector.load %arg3[%c0_2, %c0_3, %c0_4] : memref<1x32x1xf32, #tpu.memory_space<vmem>>, vector<1x32x1xf32>
    %3 = vector.shape_cast %2 : vector<1x32x1xf32> to vector<32x1xf32>
    %c0_5 = arith.constant 0 : index
    %c0_6 = arith.constant 0 : index
    %4 = vector.load %arg4[%c0_5, %c0_6] : memref<32x128xf32, #tpu.memory_space<vmem>>, vector<32x128xf32>
    %c0_7 = arith.constant 0 : index
    %c0_8 = arith.constant 0 : index
    %5 = vector.load %arg7[%c0_7, %c0_8] : memref<32x128xf32, #tpu.memory_space<vmem>>, vector<32x128xf32>
    %6 = vector.broadcast %1 : vector<1x128xf32> to vector<32x128xf32>
    %7 = arith.mulf %6, %5 : vector<32x128xf32>
    %8 = arith.addf %4, %7 : vector<32x128xf32>
    %c0_9 = arith.constant 0 : index
    %c0_10 = arith.constant 0 : index
    %9 = vector.load %arg5[%c0_9, %c0_10] : memref<32x128xf32, #tpu.memory_space<vmem>>, vector<32x128xf32>
    %c0_11 = arith.constant 0 : index
    %c0_12 = arith.constant 0 : index
    %10 = vector.load %arg8[%c0_11, %c0_12] : memref<32x128xf32, #tpu.memory_space<vmem>>, vector<32x128xf32>
    %11 = vector.broadcast %3 : vector<32x1xf32> to vector<32x128xf32>
    %12 = arith.mulf %11, %10 : vector<32x128xf32>
    %13 = arith.addf %9, %12 : vector<32x128xf32>
    %c0_13 = arith.constant 0 : index
    %c0_14 = arith.constant 0 : index
    %14 = vector.load %arg6[%c0_13, %c0_14] : memref<32x128xf32, #tpu.memory_space<vmem>>, vector<32x128xf32>
    %cst = arith.constant 0.000000e+00 : f32
    %15 = vector.broadcast %cst : f32 to vector<32x1xf32>
    %16 = arith.cmpf one, %3, %15 : vector<32x1xf32>
    %cst_15 = arith.constant 0.000000e+00 : f32
    %17 = vector.shape_cast %16 : vector<32x1xi1> to vector<32x1xi1>
    %18 = vector.broadcast %17 : vector<32x1xi1> to vector<32x128xi1>
    %19 = vector.broadcast %cst_15 : f32 to vector<32x128xf32>
    %20 = arith.select %18, %8, %19 : vector<32x128xi1>, vector<32x128xf32>
    %21 = arith.addf %14, %20 : vector<32x128xf32>
    %cst_16 = arith.constant 0.000000e+00 : f32
    %22 = vector.broadcast %cst_16 : f32 to vector<1x128xf32>
    %23 = arith.cmpf one, %1, %22 : vector<1x128xf32>
    %cst_17 = arith.constant 0.000000e+00 : f32
    %24 = vector.shape_cast %23 : vector<1x128xi1> to vector<1x128xi1>
    %25 = vector.broadcast %24 : vector<1x128xi1> to vector<32x128xi1>
    %26 = vector.broadcast %cst_17 : f32 to vector<32x128xf32>
    %27 = arith.select %25, %13, %26 : vector<32x128xi1>, vector<32x128xf32>
    %28 = arith.subf %21, %27 : vector<32x128xf32>
    %29 = arith.truncf %28 : vector<32x128xf32> to vector<32x128xbf16>
    %c0_18 = arith.constant 0 : index
    %c0_19 = arith.constant 0 : index
    %30 = vector.load %arg9[%c0_18, %c0_19] : memref<128x128xbf16, #tpu.memory_space<vmem>>, vector<128x128xbf16>
    %cst_20 = arith.constant dense<0.000000e+00> : vector<32x128xf32>
    %31 = tpu.matmul %29, %30, %cst_20 {dimension_numbers = #tpu.dot_dimension_numbers<[1], [0], [0], [1], [0, 0, 1, 1], [], []>} : vector<32x128xbf16>, vector<128x128xbf16>, vector<32x128xf32> -> vector<32x128xf32>
    %c0_21 = arith.constant 0 : index
    %c0_22 = arith.constant 0 : index
    %c0_23 = arith.constant 0 : index
    %32 = vector.load %arg12[%c0_21, %c0_22, %c0_23] : memref<1x32x128xf32, #tpu.memory_space<vmem>>, vector<1x32x128xf32>
    %33 = vector.shape_cast %32 : vector<1x32x128xf32> to vector<32x128xf32>
    %34 = vector.shape_cast %8 : vector<32x128xf32> to vector<1x32x128xf32>
    tpu.vector_store %arg12[%c0_21, %c0_22, %c0_23], %34 {strides = array<i32>} : memref<1x32x128xf32, #tpu.memory_space<vmem>>, vector<1x32x128xf32>,
    %c0_24 = arith.constant 0 : index
    %c0_25 = arith.constant 0 : index
    %c0_26 = arith.constant 0 : index
    %35 = vector.load %arg13[%c0_24, %c0_25, %c0_26] : memref<1x32x128xf32, #tpu.memory_space<vmem>>, vector<1x32x128xf32>
    %36 = vector.shape_cast %35 : vector<1x32x128xf32> to vector<32x128xf32>
    %37 = vector.shape_cast %13 : vector<32x128xf32> to vector<1x32x128xf32>
    tpu.vector_store %arg13[%c0_24, %c0_25, %c0_26], %37 {strides = array<i32>} : memref<1x32x128xf32, #tpu.memory_space<vmem>>, vector<1x32x128xf32>,
    %c0_27 = arith.constant 0 : index
    %c0_28 = arith.constant 0 : index
    %c0_29 = arith.constant 0 : index
    %38 = vector.load %arg14[%c0_27, %c0_28, %c0_29] : memref<1x32x128xf32, #tpu.memory_space<vmem>>, vector<1x32x128xf32>
    %39 = vector.shape_cast %38 : vector<1x32x128xf32> to vector<32x128xf32>
    %40 = vector.shape_cast %28 : vector<32x128xf32> to vector<1x32x128xf32>
    tpu.vector_store %arg14[%c0_27, %c0_28, %c0_29], %40 {strides = array<i32>} : memref<1x32x128xf32, #tpu.memory_space<vmem>>, vector<1x32x128xf32>,
    %c0_30 = arith.constant 0 : index
    %c0_31 = arith.constant 0 : index
    %41 = vector.load %arg10[%c0_30, %c0_31] : memref<1x128xf32, #tpu.memory_space<vmem>>, vector<1x128xf32>
    %42 = vector.broadcast %41 : vector<1x128xf32> to vector<32x128xf32>
    %43 = arith.addf %31, %42 : vector<32x128xf32>
    %c0_32 = arith.constant 0 : index
    %c0_33 = arith.constant 0 : index
    %c0_34 = arith.constant 0 : index
    %44 = vector.load %arg11[%c0_32, %c0_33, %c0_34] : memref<1x32x128xf32, #tpu.memory_space<vmem>>, vector<1x32x128xf32>
    %45 = vector.shape_cast %44 : vector<1x32x128xf32> to vector<32x128xf32>
    %46 = vector.shape_cast %43 : vector<32x128xf32> to vector<1x32x128xf32>
    tpu.vector_store %arg11[%c0_32, %c0_33, %c0_34], %46 {strides = array<i32>} : memref<1x32x128xf32, #tpu.memory_space<vmem>>, vector<1x32x128xf32>,
    return
  }
  func.func @transform_0(%arg0: i32, %arg1: i32) -> (i32, i32, i32) {
    %c0_i32 = arith.constant 0 : i32
    %c0_i32_0 = arith.constant 0 : i32
    %c0_i32_1 = arith.constant 0 : i32
    return %arg1, %c0_i32, %c0_i32_0 : i32, i32, i32
  }
  func.func @transform_1(%arg0: i32, %arg1: i32) -> (i32, i32, i32) {
    %c0_i32 = arith.constant 0 : i32
    %c0_i32_0 = arith.constant 0 : i32
    return %arg1, %arg0, %c0_i32 : i32, i32, i32
  }
  func.func @transform_2(%arg0: i32, %arg1: i32) -> (i32, i32) {
    %c0_i32 = arith.constant 0 : i32
    %c0_i32_0 = arith.constant 0 : i32
    return %arg0, %c0_i32 : i32, i32
  }
  func.func @transform_3(%arg0: i32, %arg1: i32) -> (i32, i32) {
    %c0_i32 = arith.constant 0 : i32
    %c0_i32_0 = arith.constant 0 : i32
    return %arg0, %c0_i32 : i32, i32
  }
  func.func @transform_4(%arg0: i32, %arg1: i32) -> (i32, i32) {
    %c0_i32 = arith.constant 0 : i32
    %c0_i32_0 = arith.constant 0 : i32
    return %arg0, %c0_i32 : i32, i32
  }
  func.func @transform_5(%arg0: i32, %arg1: i32) -> (i32, i32) {
    %c0_i32 = arith.constant 0 : i32
    %c0_i32_0 = arith.constant 0 : i32
    return %arg0, %c0_i32 : i32, i32
  }
  func.func @transform_6(%arg0: i32, %arg1: i32) -> (i32, i32) {
    %c0_i32 = arith.constant 0 : i32
    %c0_i32_0 = arith.constant 0 : i32
    return %arg0, %c0_i32 : i32, i32
  }
  func.func @transform_7(%arg0: i32, %arg1: i32) -> (i32, i32) {
    %c0_i32 = arith.constant 0 : i32
    %c0_i32_0 = arith.constant 0 : i32
    %c0_i32_1 = arith.constant 0 : i32
    return %c0_i32, %c0_i32_0 : i32, i32
  }
  func.func @transform_8(%arg0: i32, %arg1: i32) -> (i32, i32) {
    %c0_i32 = arith.constant 0 : i32
    %c0_i32_0 = arith.constant 0 : i32
    %c0_i32_1 = arith.constant 0 : i32
    return %c0_i32, %c0_i32_0 : i32, i32
  }
  func.func @transform_9(%arg0: i32, %arg1: i32) -> (i32, i32, i32) {
    %c0_i32 = arith.constant 0 : i32
    %c0_i32_0 = arith.constant 0 : i32
    return %arg1, %arg0, %c0_i32 : i32, i32, i32
  }
  func.func @transform_10(%arg0: i32, %arg1: i32) -> (i32, i32, i32) {
    %c0_i32 = arith.constant 0 : i32
    %c0_i32_0 = arith.constant 0 : i32
    return %arg1, %arg0, %c0_i32 : i32, i32, i32
  }
  func.func @transform_11(%arg0: i32, %arg1: i32) -> (i32, i32, i32) {
    %c0_i32 = arith.constant 0 : i32
    %c0_i32_0 = arith.constant 0 : i32
    return %arg1, %arg0, %c0_i32 : i32, i32, i32
  }
  func.func @transform_12(%arg0: i32, %arg1: i32) -> (i32, i32, i32) {
    %c0_i32 = arith.constant 0 : i32
    %c0_i32_0 = arith.constant 0 : i32
    return %arg1, %arg0, %c0_i32 : i32, i32, i32
  }
}

module attributes {stable_mosaic.version = 11 : i64} {
  func.func @kernel(%arg0: i32, %arg1: i32, %arg2: memref<1x1x128xf32, #tpu.memory_space<vmem>>, %arg3: memref<1x32x1xf32, #tpu.memory_space<vmem>>, %arg4: memref<32x128xf32, #tpu.memory_space<vmem>>, %arg5: memref<32x128xf32, #tpu.memory_space<vmem>>, %arg6: memref<32x128xf32, #tpu.memory_space<vmem>>, %arg7: memref<32x128xf32, #tpu.memory_space<vmem>>, %arg8: memref<32x128xf32, #tpu.memory_space<vmem>>, %arg9: memref<128x128xbf16, #tpu.memory_space<vmem>>, %arg10: memref<1x128xf32, #tpu.memory_space<vmem>>, %arg11: memref<1x32x128xf32, #tpu.memory_space<vmem>>, %arg12: memref<1x32x128xf32, #tpu.memory_space<vmem>>, %arg13: memref<1x32x128xf32, #tpu.memory_space<vmem>>, %arg14: memref<1x32x128xf32, #tpu.memory_space<vmem>>) attributes {dimension_semantics = [#tpu.dimension_semantics<parallel>, #tpu.dimension_semantics<parallel>], iteration_bounds = array<i64: 1, 2>, scalar_prefetch = 0 : i64, scratch_operands = 0 : i64, tpu.core_type = #tpu.core_type<tc>, window_params = [{transform_indices = @transform_0, window_bounds = array<i64: 1, 1, 128>}, {transform_indices = @transform_1, window_bounds = array<i64: 1, 32, 1>}, {transform_indices = @transform_2, window_bounds = array<i64: 32, 128>}, {transform_indices = @transform_3, window_bounds = array<i64: 32, 128>}, {transform_indices = @transform_4, window_bounds = array<i64: 32, 128>}, {transform_indices = @transform_5, window_bounds = array<i64: 32, 128>}, {transform_indices = @transform_6, window_bounds = array<i64: 32, 128>}, {pipeline_mode = #tpu.pipeline_mode<synchronous>, transform_indices = @transform_7, window_bounds = array<i64: 128, 128>}, {pipeline_mode = #tpu.pipeline_mode<synchronous>, transform_indices = @transform_8, window_bounds = array<i64: 1, 128>}, {transform_indices = @transform_9, window_bounds = array<i64: 1, 32, 128>}, {transform_indices = @transform_10, window_bounds = array<i64: 1, 32, 128>}, {transform_indices = @transform_11, window_bounds = array<i64: 1, 32, 128>}, {transform_indices = @transform_12, window_bounds = array<i64: 1, 32, 128>}]} {
    %c0 = arith.constant 0 : index
    %c0_0 = arith.constant 0 : index
    %c0_1 = arith.constant 0 : index
    %0 = vector.load %arg2[%c0, %c0_0, %c0_1] : memref<1x1x128xf32, #tpu.memory_space<vmem>>, vector<1x1x128xf32>
    %1 = vector.shape_cast %0 : vector<1x1x128xf32> to vector<1x128xf32>
    %c0_2 = arith.constant 0 : index
    %c0_3 = arith.constant 0 : index
    %c0_4 = arith.constant 0 : index
    %2 = vector.load %arg3[%c0_2, %c0_3, %c0_4] : memref<1x32x1xf32, #tpu.memory_space<vmem>>, vector<1x32x1xf32>
    %3 = vector.shape_cast %2 : vector<1x32x1xf32> to vector<32x1xf32>
    %c0_5 = arith.constant 0 : index
    %c0_6 = arith.constant 0 : index
    %4 = vector.load %arg4[%c0_5, %c0_6] : memref<32x128xf32, #tpu.memory_space<vmem>>, vector<32x128xf32>
    %c0_7 = arith.constant 0 : index
    %c0_8 = arith.constant 0 : index
    %5 = vector.load %arg7[%c0_7, %c0_8] : memref<32x128xf32, #tpu.memory_space<vmem>>, vector<32x128xf32>
    %6 = vector.broadcast %1 : vector<1x128xf32> to vector<32x128xf32>
    %7 = arith.mulf %6, %5 : vector<32x128xf32>
    %8 = arith.addf %4, %7 : vector<32x128xf32>
    %c0_9 = arith.constant 0 : index
    %c0_10 = arith.constant 0 : index
    %9 = vector.load %arg5[%c0_9, %c0_10] : memref<32x128xf32, #tpu.memory_space<vmem>>, vector<32x128xf32>
    %c0_11 = arith.constant 0 : index
    %c0_12 = arith.constant 0 : index
    %10 = vector.load %arg8[%c0_11, %c0_12] : memref<32x128xf32, #tpu.memory_space<vmem>>, vector<32x128xf32>
    %11 = vector.broadcast %3 : vector<32x1xf32> to vector<32x128xf32>
    %12 = arith.mulf %11, %10 : vector<32x128xf32>
    %13 = arith.addf %9, %12 : vector<32x128xf32>
    %c0_13 = arith.constant 0 : index
    %c0_14 = arith.constant 0 : index
    %14 = vector.load %arg6[%c0_13, %c0_14] : memref<32x128xf32, #tpu.memory_space<vmem>>, vector<32x128xf32>
    %cst = arith.constant 0.000000e+00 : f32
    %15 = vector.broadcast %cst : f32 to vector<32x1xf32>
    %16 = arith.cmpf one, %3, %15 : vector<32x1xf32>
    %cst_15 = arith.constant 0.000000e+00 : f32
    %17 = vector.shape_cast %16 : vector<32x1xi1> to vector<32x1xi1>
    %18 = vector.broadcast %17 : vector<32x1xi1> to vector<32x128xi1>
    %19 = vector.broadcast %cst_15 : f32 to vector<32x128xf32>
    %20 = arith.select %18, %8, %19 : vector<32x128xi1>, vector<32x128xf32>
    %21 = arith.addf %14, %20 : vector<32x128xf32>
    %cst_16 = arith.constant 0.000000e+00 : f32
    %22 = vector.broadcast %cst_16 : f32 to vector<1x128xf32>
    %23 = arith.cmpf one, %1, %22 : vector<1x128xf32>
    %cst_17 = arith.constant 0.000000e+00 : f32
    %24 = vector.shape_cast %23 : vector<1x128xi1> to vector<1x128xi1>
    %25 = vector.broadcast %24 : vector<1x128xi1> to vector<32x128xi1>
    %26 = vector.broadcast %cst_17 : f32 to vector<32x128xf32>
    %27 = arith.select %25, %13, %26 : vector<32x128xi1>, vector<32x128xf32>
    %28 = arith.subf %21, %27 : vector<32x128xf32>
    %29 = arith.truncf %28 : vector<32x128xf32> to vector<32x128xbf16>
    %c0_18 = arith.constant 0 : index
    %c0_19 = arith.constant 0 : index
    %30 = vector.load %arg9[%c0_18, %c0_19] : memref<128x128xbf16, #tpu.memory_space<vmem>>, vector<128x128xbf16>
    %cst_20 = arith.constant dense<0.000000e+00> : vector<32x128xf32>
    %31 = tpu.matmul %29, %30, %cst_20 {dimension_numbers = #tpu.dot_dimension_numbers<[1], [0], [0], [1], [0, 0, 1, 1], [], []>} : vector<32x128xbf16>, vector<128x128xbf16>, vector<32x128xf32> -> vector<32x128xf32>
    %c0_21 = arith.constant 0 : index
    %c0_22 = arith.constant 0 : index
    %c0_23 = arith.constant 0 : index
    %32 = vector.load %arg12[%c0_21, %c0_22, %c0_23] : memref<1x32x128xf32, #tpu.memory_space<vmem>>, vector<1x32x128xf32>
    %33 = vector.shape_cast %32 : vector<1x32x128xf32> to vector<32x128xf32>
    %34 = vector.shape_cast %8 : vector<32x128xf32> to vector<1x32x128xf32>
    tpu.vector_store %arg12[%c0_21, %c0_22, %c0_23], %34 {strides = array<i32>} : memref<1x32x128xf32, #tpu.memory_space<vmem>>, vector<1x32x128xf32>,
    %c0_24 = arith.constant 0 : index
    %c0_25 = arith.constant 0 : index
    %c0_26 = arith.constant 0 : index
    %35 = vector.load %arg13[%c0_24, %c0_25, %c0_26] : memref<1x32x128xf32, #tpu.memory_space<vmem>>, vector<1x32x128xf32>
    %36 = vector.shape_cast %35 : vector<1x32x128xf32> to vector<32x128xf32>
    %37 = vector.shape_cast %13 : vector<32x128xf32> to vector<1x32x128xf32>
    tpu.vector_store %arg13[%c0_24, %c0_25, %c0_26], %37 {strides = array<i32>} : memref<1x32x128xf32, #tpu.memory_space<vmem>>, vector<1x32x128xf32>,
    %c0_27 = arith.constant 0 : index
    %c0_28 = arith.constant 0 : index
    %c0_29 = arith.constant 0 : index
    %38 = vector.load %arg14[%c0_27, %c0_28, %c0_29] : memref<1x32x128xf32, #tpu.memory_space<vmem>>, vector<1x32x128xf32>
    %39 = vector.shape_cast %38 : vector<1x32x128xf32> to vector<32x128xf32>
    %40 = vector.shape_cast %28 : vector<32x128xf32> to vector<1x32x128xf32>
    tpu.vector_store %arg14[%c0_27, %c0_28, %c0_29], %40 {strides = array<i32>} : memref<1x32x128xf32, #tpu.memory_space<vmem>>, vector<1x32x128xf32>,
    %c0_30 = arith.constant 0 : index
    %c0_31 = arith.constant 0 : index
    %41 = vector.load %arg10[%c0_30, %c0_31] : memref<1x128xf32, #tpu.memory_space<vmem>>, vector<1x128xf32>
    %42 = vector.broadcast %41 : vector<1x128xf32> to vector<32x128xf32>
    %43 = arith.addf %31, %42 : vector<32x128xf32>
    %c0_32 = arith.constant 0 : index
    %c0_33 = arith.constant 0 : index
    %c0_34 = arith.constant 0 : index
    %44 = vector.load %arg11[%c0_32, %c0_33, %c0_34] : memref<1x32x128xf32, #tpu.memory_space<vmem>>, vector<1x32x128xf32>
    %45 = vector.shape_cast %44 : vector<1x32x128xf32> to vector<32x128xf32>
    %46 = vector.shape_cast %43 : vector<32x128xf32> to vector<1x32x128xf32>
    tpu.vector_store %arg11[%c0_32, %c0_33, %c0_34], %46 {strides = array<i32>} : memref<1x32x128xf32, #tpu.memory_space<vmem>>, vector<1x32x128xf32>,
    return
  }
  func.func @transform_0(%arg0: i32, %arg1: i32) -> (i32, i32, i32) {
    %c0_i32 = arith.constant 0 : i32
    %c0_i32_0 = arith.constant 0 : i32
    %c0_i32_1 = arith.constant 0 : i32
    return %arg1, %c0_i32, %c0_i32_0 : i32, i32, i32
  }
  func.func @transform_1(%arg0: i32, %arg1: i32) -> (i32, i32, i32) {
    %c0_i32 = arith.constant 0 : i32
    %c0_i32_0 = arith.constant 0 : i32
    return %arg1, %arg0, %c0_i32 : i32, i32, i32
  }
  func.func @transform_2(%arg0: i32, %arg1: i32) -> (i32, i32) {
    %c0_i32 = arith.constant 0 : i32
    %c0_i32_0 = arith.constant 0 : i32
    return %arg0, %c0_i32 : i32, i32
  }
  func.func @transform_3(%arg0: i32, %arg1: i32) -> (i32, i32) {
    %c0_i32 = arith.constant 0 : i32
    %c0_i32_0 = arith.constant 0 : i32
    return %arg0, %c0_i32 : i32, i32
  }
  func.func @transform_4(%arg0: i32, %arg1: i32) -> (i32, i32) {
    %c0_i32 = arith.constant 0 : i32
    %c0_i32_0 = arith.constant 0 : i32
    return %arg0, %c0_i32 : i32, i32
  }
  func.func @transform_5(%arg0: i32, %arg1: i32) -> (i32, i32) {
    %c0_i32 = arith.constant 0 : i32
    %c0_i32_0 = arith.constant 0 : i32
    return %arg0, %c0_i32 : i32, i32
  }
  func.func @transform_6(%arg0: i32, %arg1: i32) -> (i32, i32) {
    %c0_i32 = arith.constant 0 : i32
    %c0_i32_0 = arith.constant 0 : i32
    return %arg0, %c0_i32 : i32, i32
  }
  func.func @transform_7(%arg0: i32, %arg1: i32) -> (i32, i32) {
    %c0_i32 = arith.constant 0 : i32
    %c0_i32_0 = arith.constant 0 : i32
    %c0_i32_1 = arith.constant 0 : i32
    return %c0_i32, %c0_i32_0 : i32, i32
  }
  func.func @transform_8(%arg0: i32, %arg1: i32) -> (i32, i32) {
    %c0_i32 = arith.constant 0 : i32
    %c0_i32_0 = arith.constant 0 : i32
    %c0_i32_1 = arith.constant 0 : i32
    return %c0_i32, %c0_i32_0 : i32, i32
  }
  func.func @transform_9(%arg0: i32, %arg1: i32) -> (i32, i32, i32) {
    %c0_i32 = arith.constant 0 : i32
    %c0_i32_0 = arith.constant 0 : i32
    return %arg1, %arg0, %c0_i32 : i32, i32, i32
  }
  func.func @transform_10(%arg0: i32, %arg1: i32) -> (i32, i32, i32) {
    %c0_i32 = arith.constant 0 : i32
    %c0_i32_0 = arith.constant 0 : i32
    return %arg1, %arg0, %c0_i32 : i32, i32, i32
  }
  func.func @transform_11(%arg0: i32, %arg1: i32) -> (i32, i32, i32) {
    %c0_i32 = arith.constant 0 : i32
    %c0_i32_0 = arith.constant 0 : i32
    return %arg1, %arg0, %c0_i32 : i32, i32, i32
  }
  func.func @transform_12(%arg0: i32, %arg1: i32) -> (i32, i32, i32) {
    %c0_i32 = arith.constant 0 : i32
    %c0_i32_0 = arith.constant 0 : i32
    return %arg1, %arg0, %c0_i32 : i32, i32, i32
  }
}

</mosaic_0001>

<llo_original>
// kernel: tpu_custom_call.1
$region0: #{tpu_custom_call.1}
  #allocation0 [shape = 'u32[]', space=smem, size = 0x4, offset = 0x4, fixed_abs, tag = 'smem constant byte address 0x4 - core index']
  #allocation1 [shape = 'u32[72,128]{1,0:T(1,128)}', space=vmem, size = 0x9000, scoped, tag = 'internal scratch']
  %s0 = inlined_call_operand.vmem [shape: f32[2,1,128], index: 0, kind: input, shape index: {}]
  %s1 = inlined_call_operand.vmem [shape: f32[2,32,1], index: 1, kind: input, shape index: {}]
  %s2 = inlined_call_operand.hbm [shape: f32[32,128], index: 2, kind: input, shape index: {}]
  %s3 = inlined_call_operand.hbm [shape: f32[32,128], index: 3, kind: input, shape index: {}]
  %s4 = inlined_call_operand.hbm [shape: f32[32,128], index: 4, kind: input, shape index: {}]
  %s5 = inlined_call_operand.hbm [shape: f32[32,128], index: 5, kind: input, shape index: {}]
  %s6 = inlined_call_operand.hbm [shape: f32[32,128], index: 6, kind: input, shape index: {}]
  %s7 = inlined_call_operand.vmem [shape: bf16[128,128], index: 7, kind: input, shape index: {}]
  %s8 = inlined_call_operand.vmem [shape: f32[1,128], index: 8, kind: input, shape index: {}]
  %s9 = inlined_call_operand.hbm [shape: f32[2,32,128], index: 9, kind: output, shape index: {0}]
  %s10 = inlined_call_operand.hbm [shape: f32[2,32,128], index: 10, kind: output, shape index: {1}]
  %s11 = inlined_call_operand.hbm [shape: f32[2,32,128], index: 11, kind: output, shape index: {2}]
  %s12 = inlined_call_operand.hbm [shape: f32[2,32,128], index: 12, kind: output, shape index: {3}]
  %13 = xla_tuple %s9, %s10, %s11, %s12
  %s14 = sld [smem:[#allocation0]]
  $region113: #{tpu_custom_call.1} parent=0
    _
  %s16 = ssub.s32 1, %s14
  %s17 = scalar_select 0, %s16, %s14
  $region1: #{tpu_custom_call.1} parent=0
    #allocation2 [shape = 'u8[16384]{0}', space=vmem, size = 0x4000, scoped, tag = 'input window, operand 2, single buffered']
    #allocation3 [shape = 's32[2]{0}', space=sflag, size = 0x8, scoped, tag = 'scoped memory for tpu_custom_call.1']
    #allocation4 [shape = 's32[2]{0}', space=sflag, size = 0x8, scoped, tag = 'scoped memory for tpu_custom_call.1']
    #allocation5 [shape = 'u8[16384]{0}', space=vmem, size = 0x4000, scoped, tag = 'input window, operand 3, single buffered']
    #allocation6 [shape = 's32[1]{0}', space=sflag, size = 0x4, scoped, tag = 'scoped memory for tpu_custom_call.1']
    #allocation7 [shape = 'u8[16384]{0}', space=vmem, size = 0x4000, scoped, tag = 'input window, operand 4, single buffered']
    #allocation8 [shape = 'u8[16384]{0}', space=vmem, size = 0x4000, scoped, tag = 'input window, operand 5, single buffered']
    #allocation9 [shape = 's32[1]{0}', space=sflag, size = 0x4, scoped, tag = 'scoped memory for tpu_custom_call.1']
    #allocation10 [shape = 'u8[16384]{0}', space=vmem, size = 0x4000, scoped, tag = 'input window, operand 6, single buffered']
    #allocation11 [shape = 'u8[32768]{0}', space=vmem, size = 0x8000, scoped, tag = 'output window, operand 0']
    #allocation12 [shape = 'u8[32768]{0}', space=vmem, size = 0x8000, scoped, tag = 'output window, operand 1']
    #allocation13 [shape = 's32[2]{0}', space=sflag, size = 0x8, scoped, tag = 'scoped memory for tpu_custom_call.1']
    #allocation14 [shape = 'u8[32768]{0}', space=vmem, size = 0x8000, scoped, tag = 'output window, operand 2']
    #allocation15 [shape = 'u8[32768]{0}', space=vmem, size = 0x8000, scoped, tag = 'output window, operand 3']
    #allocation16 [shape = 's32[2]{0}', space=sflag, size = 0x8, scoped, tag = 'scoped memory for tpu_custom_call.1']
    %18 = vsyncpa [#allocation3], 0
    %19 = vsyncpa [#allocation6], 0
    %20 = vsyncpa [#allocation9], 0
    %21 = vsyncpa [#allocation4], 0
    %s22 = scalar_lea.sflag [#allocation4], 1
    %23 = vsyncpa %s22, 0
    %24 = vsyncpa [#allocation13], 0
    %s25 = scalar_lea.sflag [#allocation13], 1
    %26 = vsyncpa %s25, 0
    %27 = vsyncpa [#allocation16], 0
    %s28 = scalar_lea.sflag [#allocation16], 1
    %29 = vsyncpa %s28, 0
    loop: start=0, step=1, limit=4
    $region2: #{tpu_custom_call.1} parent=1 // loop_pre_header
      _
    $region3: #{tpu_custom_call.1} parent=1 // loop_header
      %s31 = sphi 0, %s35
      %p32 = scmp.ge.s32.totalorder %s31, 4
      %s38 = sphi 0, %s50
      %s39 = sphi 0, %s46
      %s40 = sphi 0, %s38
      %s41 = sphi 0, %s39
      %s42 = sphi 0, %s40
      %s43 = sphi 0, %s41
      %s53 = sphi 0, %s55
      %s56 = sphi 0, %s53
      %s57 = sphi 0, %s56
      %s73 = sphi 0, %s57
      %s81 = sphi 0, %s83
      %s84 = sphi 0, %s81
      %s85 = sphi 0, %s84
      %s101 = sphi 0, %s85
      %s107 = sphi 0, %s109
      %s110 = sphi 0, %s107
      %s111 = sphi 0, %s110
      %s127 = sphi 0, %s111
      %s133 = sphi 0, %s135
      %s136 = sphi 0, %s133
      %s137 = sphi 0, %s136
      %s153 = sphi 0, %s137
      %s159 = sphi 0, %s161
      %s162 = sphi 0, %s159
      %s163 = sphi 0, %s162
      %s179 = sphi 0, %s163
      %s185 = sphi 0, %s187
      %s188 = sphi 0, %s185
      %s189 = sphi 0, %s188
      %s205 = sphi 0, %s189
      %s211 = sphi 0, %s213
      %s214 = sphi 0, %s211
      %s215 = sphi 0, %s214
      %s231 = sphi 0, %s215
      %s235 = sphi 0, %s235
      %s237 = sphi 0, %s235
      %s238 = sphi 0, %s237
      %s252 = sphi 0, %s238
      %s256 = sphi 0, %s256
      %s258 = sphi 0, %s256
      %s259 = sphi 0, %s258
      %s273 = sphi 0, %s259
      %s281 = sphi 0, %s283
      %s284 = sphi 0, %s281
      %s285 = sphi 0, %s284
      %s301 = sphi 0, %s285
      %s309 = sphi 0, %s311
      %s312 = sphi 0, %s309
      %s313 = sphi 0, %s312
      %s329 = sphi 0, %s313
      %s337 = sphi 0, %s339
      %s340 = sphi 0, %s337
      %s341 = sphi 0, %s340
      %s357 = sphi 0, %s341
      %s365 = sphi 0, %s367
      %s368 = sphi 0, %s365
      %s369 = sphi 0, %s368
      %s385 = sphi 0, %s369
    $region4: #{tpu_custom_call.1} parent=1 // loop_header_branch
      %34 = sbr.rel (%p32) target = $region8
    $region5: #{tpu_custom_call.1} parent=1 // loop_body
      %s36 = ssub.s32 %s31, 1
      %s37 = ssub.s32 %s31, 2
      %s44 = sadd.s32 1, %s39
      %p45 = scmp.ge.s32.totalorder %s44, 2
      %s46 = scalar_select %p45, 0, %s44
      %s47 = sadd.s32 1, %s38
      %s48 = scalar_select %p45, %s47, %s38
      %p49 = scmp.ge.s32.totalorder %s48, 1
      %s50 = scalar_select %p49, 0, %s48
      %s51 = ssub.s32 %s39, %s46
      %p52 = scmp.eq.s32.totalorder %s51, 0
      %s54 = sadd.s32 %s53, 1
      %s55 = scalar_select %p52, %s53, %s54
      %p58 = pneg %p52
      %p59 = scmp.eq.s32.totalorder %s31, 1
      %p60 = por %p58, %p59
      %p61 = scmp.ne.s32.totalorder %s53, %s56
      %p62 = scmp.eq.s32.totalorder %s31, 0
      %p63 = por %p61, %p62
      %p64 = scmp.ne.s32.totalorder %s53, %s56
      %p65 = scmp.eq.s32.totalorder %s36, 1
      %p66 = por %p64, %p65
      %p67 = scmp.ne.s32.totalorder %s56, %s57
      %p68 = scmp.eq.s32.totalorder %s36, 0
      %p69 = por %p67, %p68
      %p70 = scmp.ne.s32.totalorder %s56, %s57
      %p71 = scmp.eq.s32.totalorder %s37, 1
      %p72 = por %p70, %p71
      %p74 = scmp.ne.s32.totalorder %s57, %s73
      %p75 = scmp.eq.s32.totalorder %s37, 0
      %p76 = por %p74, %p75
      %s77 = ssub.s32 %s39, %s46
      %s78 = ssub.s32 %s38, %s50
      %s79 = sor.u32 %s77, %s78
      %p80 = scmp.eq.s32.totalorder %s79, 0
      %s82 = sadd.s32 %s81, 1
      %s83 = scalar_select %p80, %s81, %s82
      %p86 = pneg %p80
      %p87 = scmp.eq.s32.totalorder %s31, 1
      %p88 = por %p86, %p87
      %p89 = scmp.ne.s32.totalorder %s81, %s84
      %p90 = scmp.eq.s32.totalorder %s31, 0
      %p91 = por %p89, %p90
      %p92 = scmp.ne.s32.totalorder %s81, %s84
      %p93 = scmp.eq.s32.totalorder %s36, 1
      %p94 = por %p92, %p93
      %p95 = scmp.ne.s32.totalorder %s84, %s85
      %p96 = scmp.eq.s32.totalorder %s36, 0
      %p97 = por %p95, %p96
      %p98 = scmp.ne.s32.totalorder %s84, %s85
      %p99 = scmp.eq.s32.totalorder %s37, 1
      %p100 = por %p98, %p99
      %p102 = scmp.ne.s32.totalorder %s85, %s101
      %p103 = scmp.eq.s32.totalorder %s37, 0
      %p104 = por %p102, %p103
      %s105 = ssub.s32 %s38, %s50
      %p106 = scmp.eq.s32.totalorder %s105, 0
      %s108 = sadd.s32 %s107, 1
      %s109 = scalar_select %p106, %s107, %s108
      %p112 = pneg %p106
      %p113 = scmp.eq.s32.totalorder %s31, 1
      %p114 = por %p112, %p113
      %p115 = scmp.ne.s32.totalorder %s107, %s110
      %p116 = scmp.eq.s32.totalorder %s31, 0
      %p117 = por %p115, %p116
      %p118 = scmp.ne.s32.totalorder %s107, %s110
      %p119 = scmp.eq.s32.totalorder %s36, 1
      %p120 = por %p118, %p119
      %p121 = scmp.ne.s32.totalorder %s110, %s111
      %p122 = scmp.eq.s32.totalorder %s36, 0
      %p123 = por %p121, %p122
      %p124 = scmp.ne.s32.totalorder %s110, %s111
      %p125 = scmp.eq.s32.totalorder %s37, 1
      %p126 = por %p124, %p125
      %p128 = scmp.ne.s32.totalorder %s111, %s127
      %p129 = scmp.eq.s32.totalorder %s37, 0
      %p130 = por %p128, %p129
      %s131 = ssub.s32 %s38, %s50
      %p132 = scmp.eq.s32.totalorder %s131, 0
      %s134 = sadd.s32 %s133, 1
      %s135 = scalar_select %p132, %s133, %s134
      %p138 = pneg %p132
      %p139 = scmp.eq.s32.totalorder %s31, 1
      %p140 = por %p138, %p139
      %p141 = scmp.ne.s32.totalorder %s133, %s136
      %p142 = scmp.eq.s32.totalorder %s31, 0
      %p143 = por %p141, %p142
      %p144 = scmp.ne.s32.totalorder %s133, %s136
      %p145 = scmp.eq.s32.totalorder %s36, 1
      %p146 = por %p144, %p145
      %p147 = scmp.ne.s32.totalorder %s136, %s137
      %p148 = scmp.eq.s32.totalorder %s36, 0
      %p149 = por %p147, %p148
      %p150 = scmp.ne.s32.totalorder %s136, %s137
      %p151 = scmp.eq.s32.totalorder %s37, 1
      %p152 = por %p150, %p151
      %p154 = scmp.ne.s32.totalorder %s137, %s153
      %p155 = scmp.eq.s32.totalorder %s37, 0
      %p156 = por %p154, %p155
      %s157 = ssub.s32 %s38, %s50
      %p158 = scmp.eq.s32.totalorder %s157, 0
      %s160 = sadd.s32 %s159, 1
      %s161 = scalar_select %p158, %s159, %s160
      %p164 = pneg %p158
      %p165 = scmp.eq.s32.totalorder %s31, 1
      %p166 = por %p164, %p165
      %p167 = scmp.ne.s32.totalorder %s159, %s162
      %p168 = scmp.eq.s32.totalorder %s31, 0
      %p169 = por %p167, %p168
      %p170 = scmp.ne.s32.totalorder %s159, %s162
      %p171 = scmp.eq.s32.totalorder %s36, 1
      %p172 = por %p170, %p171
      %p173 = scmp.ne.s32.totalorder %s162, %s163
      %p174 = scmp.eq.s32.totalorder %s36, 0
      %p175 = por %p173, %p174
      %p176 = scmp.ne.s32.totalorder %s162, %s163
      %p177 = scmp.eq.s32.totalorder %s37, 1
      %p178 = por %p176, %p177
      %p180 = scmp.ne.s32.totalorder %s163, %s179
      %p181 = scmp.eq.s32.totalorder %s37, 0
      %p182 = por %p180, %p181
      %s183 = ssub.s32 %s38, %s50
      %p184 = scmp.eq.s32.totalorder %s183, 0
      %s186 = sadd.s32 %s185, 1
      %s187 = scalar_select %p184, %s185, %s186
      %p190 = pneg %p184
      %p191 = scmp.eq.s32.totalorder %s31, 1
      %p192 = por %p190, %p191
      %p193 = scmp.ne.s32.totalorder %s185, %s188
      %p194 = scmp.eq.s32.totalorder %s31, 0
      %p195 = por %p193, %p194
      %p196 = scmp.ne.s32.totalorder %s185, %s188
      %p197 = scmp.eq.s32.totalorder %s36, 1
      %p198 = por %p196, %p197
      %p199 = scmp.ne.s32.totalorder %s188, %s189
      %p200 = scmp.eq.s32.totalorder %s36, 0
      %p201 = por %p199, %p200
      %p202 = scmp.ne.s32.totalorder %s188, %s189
      %p203 = scmp.eq.s32.totalorder %s37, 1
      %p204 = por %p202, %p203
      %p206 = scmp.ne.s32.totalorder %s189, %s205
      %p207 = scmp.eq.s32.totalorder %s37, 0
      %p208 = por %p206, %p207
      %s209 = ssub.s32 %s38, %s50
      %p210 = scmp.eq.s32.totalorder %s209, 0
      %s212 = sadd.s32 %s211, 1
      %s213 = scalar_select %p210, %s211, %s212
      %p216 = pneg %p210
      %p217 = scmp.eq.s32.totalorder %s31, 1
      %p218 = por %p216, %p217
      %p219 = scmp.ne.s32.totalorder %s211, %s214
      %p220 = scmp.eq.s32.totalorder %s31, 0
      %p221 = por %p219, %p220
      %p222 = scmp.ne.s32.totalorder %s211, %s214
      %p223 = scmp.eq.s32.totalorder %s36, 1
      %p224 = por %p222, %p223
      %p225 = scmp.ne.s32.totalorder %s214, %s215
      %p226 = scmp.eq.s32.totalorder %s36, 0
      %p227 = por %p225, %p226
      %p228 = scmp.ne.s32.totalorder %s214, %s215
      %p229 = scmp.eq.s32.totalorder %s37, 1
      %p230 = por %p228, %p229
      %p232 = scmp.ne.s32.totalorder %s215, %s231
      %p233 = scmp.eq.s32.totalorder %s37, 0
      %p234 = por %p232, %p233
      %s236 = sadd.s32 %s235, 1
      %p239 = scmp.eq.s32.totalorder %s31, 1
      %p240 = scmp.ne.s32.totalorder %s235, %s237
      %p241 = scmp.eq.s32.totalorder %s31, 0
      %p242 = por %p240, %p241
      %p243 = scmp.ne.s32.totalorder %s235, %s237
      %p244 = scmp.eq.s32.totalorder %s36, 1
      %p245 = por %p243, %p244
      %p246 = scmp.ne.s32.totalorder %s237, %s238
      %p247 = scmp.eq.s32.totalorder %s36, 0
      %p248 = por %p246, %p247
      %p249 = scmp.ne.s32.totalorder %s237, %s238
      %p250 = scmp.eq.s32.totalorder %s37, 1
      %p251 = por %p249, %p250
      %p253 = scmp.ne.s32.totalorder %s238, %s252
      %p254 = scmp.eq.s32.totalorder %s37, 0
      %p255 = por %p253, %p254
      %s257 = sadd.s32 %s256, 1
      %p260 = scmp.eq.s32.totalorder %s31, 1
      %p261 = scmp.ne.s32.totalorder %s256, %s258
      %p262 = scmp.eq.s32.totalorder %s31, 0
      %p263 = por %p261, %p262
      %p264 = scmp.ne.s32.totalorder %s256, %s258
      %p265 = scmp.eq.s32.totalorder %s36, 1
      %p266 = por %p264, %p265
      %p267 = scmp.ne.s32.totalorder %s258, %s259
      %p268 = scmp.eq.s32.totalorder %s36, 0
      %p269 = por %p267, %p268
      %p270 = scmp.ne.s32.totalorder %s258, %s259
      %p271 = scmp.eq.s32.totalorder %s37, 1
      %p272 = por %p270, %p271
      %p274 = scmp.ne.s32.totalorder %s259, %s273
      %p275 = scmp.eq.s32.totalorder %s37, 0
      %p276 = por %p274, %p275
      %s277 = ssub.s32 %s39, %s46
      %s278 = ssub.s32 %s38, %s50
      %s279 = sor.u32 %s277, %s278
      %p280 = scmp.eq.s32.totalorder %s279, 0
      %s282 = sadd.s32 %s281, 1
      %s283 = scalar_select %p280, %s281, %s282
      %p286 = pneg %p280
      %p287 = scmp.eq.s32.totalorder %s31, 1
      %p288 = por %p286, %p287
      %p289 = scmp.ne.s32.totalorder %s281, %s284
      %p290 = scmp.eq.s32.totalorder %s31, 0
      %p291 = por %p289, %p290
      %p292 = scmp.ne.s32.totalorder %s281, %s284
      %p293 = scmp.eq.s32.totalorder %s36, 1
      %p294 = por %p292, %p293
      %p295 = scmp.ne.s32.totalorder %s284, %s285
      %p296 = scmp.eq.s32.totalorder %s36, 0
      %p297 = por %p295, %p296
      %p298 = scmp.ne.s32.totalorder %s284, %s285
      %p299 = scmp.eq.s32.totalorder %s37, 1
      %p300 = por %p298, %p299
      %p302 = scmp.ne.s32.totalorder %s285, %s301
      %p303 = scmp.eq.s32.totalorder %s37, 0
      %p304 = por %p302, %p303
      %s305 = ssub.s32 %s39, %s46
      %s306 = ssub.s32 %s38, %s50
      %s307 = sor.u32 %s305, %s306
      %p308 = scmp.eq.s32.totalorder %s307, 0
      %s310 = sadd.s32 %s309, 1
      %s311 = scalar_select %p308, %s309, %s310
      %p314 = pneg %p308
      %p315 = scmp.eq.s32.totalorder %s31, 1
      %p316 = por %p314, %p315
      %p317 = scmp.ne.s32.totalorder %s309, %s312
      %p318 = scmp.eq.s32.totalorder %s31, 0
      %p319 = por %p317, %p318
      %p320 = scmp.ne.s32.totalorder %s309, %s312
      %p321 = scmp.eq.s32.totalorder %s36, 1
      %p322 = por %p320, %p321
      %p323 = scmp.ne.s32.totalorder %s312, %s313
      %p324 = scmp.eq.s32.totalorder %s36, 0
      %p325 = por %p323, %p324
      %p326 = scmp.ne.s32.totalorder %s312, %s313
      %p327 = scmp.eq.s32.totalorder %s37, 1
      %p328 = por %p326, %p327
      %p330 = scmp.ne.s32.totalorder %s313, %s329
      %p331 = scmp.eq.s32.totalorder %s37, 0
      %p332 = por %p330, %p331
      %s333 = ssub.s32 %s39, %s46
      %s334 = ssub.s32 %s38, %s50
      %s335 = sor.u32 %s333, %s334
      %p336 = scmp.eq.s32.totalorder %s335, 0
      %s338 = sadd.s32 %s337, 1
      %s339 = scalar_select %p336, %s337, %s338
      %p342 = pneg %p336
      %p343 = scmp.eq.s32.totalorder %s31, 1
      %p344 = por %p342, %p343
      %p345 = scmp.ne.s32.totalorder %s337, %s340
      %p346 = scmp.eq.s32.totalorder %s31, 0
      %p347 = por %p345, %p346
      %p348 = scmp.ne.s32.totalorder %s337, %s340
      %p349 = scmp.eq.s32.totalorder %s36, 1
      %p350 = por %p348, %p349
      %p351 = scmp.ne.s32.totalorder %s340, %s341
      %p352 = scmp.eq.s32.totalorder %s36, 0
      %p353 = por %p351, %p352
      %p354 = scmp.ne.s32.totalorder %s340, %s341
      %p355 = scmp.eq.s32.totalorder %s37, 1
      %p356 = por %p354, %p355
      %p358 = scmp.ne.s32.totalorder %s341, %s357
      %p359 = scmp.eq.s32.totalorder %s37, 0
      %p360 = por %p358, %p359
      %s361 = ssub.s32 %s39, %s46
      %s362 = ssub.s32 %s38, %s50
      %s363 = sor.u32 %s361, %s362
      %p364 = scmp.eq.s32.totalorder %s363, 0
      %s366 = sadd.s32 %s365, 1
      %s367 = scalar_select %p364, %s365, %s366
      %p370 = pneg %p364
      %p371 = scmp.eq.s32.totalorder %s31, 1
      %p372 = por %p370, %p371
      %p373 = scmp.ne.s32.totalorder %s365, %s368
      %p374 = scmp.eq.s32.totalorder %s31, 0
      %p375 = por %p373, %p374
      %p376 = scmp.ne.s32.totalorder %s365, %s368
      %p377 = scmp.eq.s32.totalorder %s36, 1
      %p378 = por %p376, %p377
      %p379 = scmp.ne.s32.totalorder %s368, %s369
      %p380 = scmp.eq.s32.totalorder %s36, 0
      %p381 = por %p379, %p380
      %p382 = scmp.ne.s32.totalorder %s368, %s369
      %p383 = scmp.eq.s32.totalorder %s37, 1
      %p384 = por %p382, %p383
      %p386 = scmp.ne.s32.totalorder %s369, %s385
      %p387 = scmp.eq.s32.totalorder %s37, 0
      %p388 = por %p386, %p387
      %p389 = scmp.le.s32.totalorder 1, %s31
      %p390 = scmp.lt.s32.totalorder %s31, 3
      %p391 = pnand %p389, %p390
      %p392 = pneg %p391
      // Predicated region
      $region9: #{tpu_custom_call.1} parent=5 // pred_check
        _
      $region10: #{tpu_custom_call.1} parent=5 // pred_check_branch
        %394 = sbr.rel (%p391) target = $region12
      $region11: #{tpu_custom_call.1} parent=5 // pred_region
        %s395 = ssub.s32 %s31, 1
        // Predicated region
        $region13: #{tpu_custom_call.1} parent=11 // pred_check
          %p396 = pneg %p123
        $region14: #{tpu_custom_call.1} parent=11 // pred_check_branch
          %398 = sbr.rel (%p396) target = $region16
        $region15: #{tpu_custom_call.1} parent=11 // pred_region
          %s399 = smul.u32 4, %s40
          %401 = vsyncadd [#allocation3], 0
          %s402 = smul.addr %s399, 8
          %s403 = scalar_lea.hbm %s2, %s402
          %s404 = sshll.u32 %s403, 4
          %s405 = int_to_ptr.hbm [resolvable:$true] %s404
          %s406 = sshll.u32 [#allocation2], 4
          %s407 = int_to_ptr.vmem [resolvable:$true] %s406
          %412 = dma.hbm_to_vmem [thread:$0]  %s405, 512, %s407, [#allocation3], 128, 128, 8
        $region16: #{tpu_custom_call.1} parent=11 // pred_fallthru
          _
        // Predicated region
        $region17: #{tpu_custom_call.1} parent=11 // pred_check
          %p413 = pneg %p149
        $region18: #{tpu_custom_call.1} parent=11 // pred_check_branch
          %415 = sbr.rel (%p413) target = $region20
        $region19: #{tpu_custom_call.1} parent=11 // pred_region
          %s416 = smul.u32 4, %s40
          %418 = vsyncadd [#allocation6], 0
          %s419 = smul.addr %s416, 8
          %s420 = scalar_lea.hbm %s3, %s419
          %s421 = sshll.u32 %s420, 4
          %s422 = int_to_ptr.hbm [resolvable:$true] %s421
          %s423 = sshll.u32 [#allocation5], 4
          %s424 = int_to_ptr.vmem [resolvable:$true] %s423
          %429 = dma.hbm_to_vmem [thread:$0]  %s422, 512, %s424, [#allocation6], 128, 128, 8
        $region20: #{tpu_custom_call.1} parent=11 // pred_fallthru
          _
        // Predicated region
        $region21: #{tpu_custom_call.1} parent=11 // pred_check
          %p430 = pneg %p175
        $region22: #{tpu_custom_call.1} parent=11 // pred_check_branch
          %432 = sbr.rel (%p430) target = $region24
        $region23: #{tpu_custom_call.1} parent=11 // pred_region
          %s433 = smul.u32 4, %s40
          %435 = vsyncadd [#allocation6], 0
          %s436 = smul.addr %s433, 8
          %s437 = scalar_lea.hbm %s4, %s436
          %s438 = sshll.u32 %s437, 4
          %s439 = int_to_ptr.hbm [resolvable:$true] %s438
          %s440 = sshll.u32 [#allocation7], 4
          %s441 = int_to_ptr.vmem [resolvable:$true] %s440
          %446 = dma.hbm_to_vmem [thread:$0]  %s439, 512, %s441, [#allocation6], 128, 128, 8
        $region24: #{tpu_custom_call.1} parent=11 // pred_fallthru
          _
        // Predicated region
        $region25: #{tpu_custom_call.1} parent=11 // pred_check
          %p447 = pneg %p201
        $region26: #{tpu_custom_call.1} parent=11 // pred_check_branch
          %449 = sbr.rel (%p447) target = $region28
        $region27: #{tpu_custom_call.1} parent=11 // pred_region
          %s450 = smul.u32 4, %s40
          %452 = vsyncadd [#allocation9], 0
          %s453 = smul.addr %s450, 8
          %s454 = scalar_lea.hbm %s5, %s453
          %s455 = sshll.u32 %s454, 4
          %s456 = int_to_ptr.hbm [resolvable:$true] %s455
          %s457 = sshll.u32 [#allocation8], 4
          %s458 = int_to_ptr.vmem [resolvable:$true] %s457
          %463 = dma.hbm_to_vmem [thread:$0]  %s456, 512, %s458, [#allocation9], 128, 128, 8
        $region28: #{tpu_custom_call.1} parent=11 // pred_fallthru
          _
        // Predicated region
        $region29: #{tpu_custom_call.1} parent=11 // pred_check
          %p464 = pneg %p227
        $region30: #{tpu_custom_call.1} parent=11 // pred_check_branch
          %466 = sbr.rel (%p464) target = $region32
        $region31: #{tpu_custom_call.1} parent=11 // pred_region
          %s467 = smul.u32 4, %s40
          %469 = vsyncadd [#allocation9], 0
          %s470 = smul.addr %s467, 8
          %s471 = scalar_lea.hbm %s6, %s470
          %s472 = sshll.u32 %s471, 4
          %s473 = int_to_ptr.hbm [resolvable:$true] %s472
          %s474 = sshll.u32 [#allocation10], 4
          %s475 = int_to_ptr.vmem [resolvable:$true] %s474
          %480 = dma.hbm_to_vmem [thread:$0]  %s473, 512, %s475, [#allocation9], 128, 128, 8
        $region32: #{tpu_custom_call.1} parent=11 // pred_fallthru
          _
        // Predicated region
        $region33: #{tpu_custom_call.1} parent=11 // pred_check
          %p481 = pneg %p248
        $region34: #{tpu_custom_call.1} parent=11 // pred_check_branch
          %483 = sbr.rel (%p481) target = $region36
        $region35: #{tpu_custom_call.1} parent=11 // pred_region
          _
        $region36: #{tpu_custom_call.1} parent=11 // pred_fallthru
          _
        // Predicated region
        $region37: #{tpu_custom_call.1} parent=11 // pred_check
          %p484 = pneg %p269
        $region38: #{tpu_custom_call.1} parent=11 // pred_check_branch
          %486 = sbr.rel (%p484) target = $region40
        $region39: #{tpu_custom_call.1} parent=11 // pred_region
          _
        $region40: #{tpu_custom_call.1} parent=11 // pred_fallthru
          _
      $region12: #{tpu_custom_call.1} parent=5 // pred_fallthru
        _
      %p487 = scmp.lt.s32.totalorder %s31, 2
      // Predicated region
      $region41: #{tpu_custom_call.1} parent=5 // pred_check
        %p488 = pneg %p487
      $region42: #{tpu_custom_call.1} parent=5 // pred_check_branch
        %490 = sbr.rel (%p488) target = $region44
      $region43: #{tpu_custom_call.1} parent=5 // pred_region
        // Predicated region
        $region45: #{tpu_custom_call.1} parent=43 // pred_check
          %p491 = pneg %p63
        $region46: #{tpu_custom_call.1} parent=43 // pred_check_branch
          %493 = sbr.rel (%p491) target = $region48
        $region47: #{tpu_custom_call.1} parent=43 // pred_region
          %p494 = scmp.lt.s32.totalorder %s39, 1
          %s495 = scalar_select %p494, %s39, 1
          %s496 = scalar_lea.vmem %s0, %s495
        $region48: #{tpu_custom_call.1} parent=43 // pred_fallthru
          _
        // Predicated region
        $region49: #{tpu_custom_call.1} parent=43 // pred_check
          %p497 = pneg %p91
        $region50: #{tpu_custom_call.1} parent=43 // pred_check_branch
          %499 = sbr.rel (%p497) target = $region52
        $region51: #{tpu_custom_call.1} parent=43 // pred_region
          %s500 = smul.u32 4, %s38
          %p501 = scmp.lt.s32.totalorder %s39, 1
          %s502 = scalar_select %p501, %s39, 1
          %p503 = scmp.lt.s32.totalorder %s500, 3
          %s504 = scalar_select %p503, %s500, 3
          %s505 = smul.addr %s502, 4
          %s506 = sadd.s32 %s504, %s505
          %s507 = smul.addr %s506, 8
          %s508 = scalar_lea.vmem %s1, %s507
          %s509 = smul.u32 4, %s38
        $region52: #{tpu_custom_call.1} parent=43 // pred_fallthru
          _
      $region44: #{tpu_custom_call.1} parent=5 // pred_fallthru
        _
      %p510 = scmp.le.s32.totalorder 1, %s31
      %p511 = scmp.lt.s32.totalorder %s31, 3
      %p512 = pnand %p510, %p511
      %p513 = pneg %p512
      // Predicated region
      $region53: #{tpu_custom_call.1} parent=5 // pred_check
        _
      $region54: #{tpu_custom_call.1} parent=5 // pred_check_branch
        %515 = sbr.rel (%p512) target = $region56
      $region55: #{tpu_custom_call.1} parent=5 // pred_region
        %s516 = ssub.s32 %s31, 1
        // Predicated region
        $region57: #{tpu_custom_call.1} parent=55 // pred_check
          %p517 = pneg %p123
        $region58: #{tpu_custom_call.1} parent=55 // pred_check_branch
          %519 = sbr.rel (%p517) target = $region60
        $region59: #{tpu_custom_call.1} parent=55 // pred_region
          %521 = dma.done [#allocation3], 512
        $region60: #{tpu_custom_call.1} parent=55 // pred_fallthru
          _
        // Predicated region
        $region61: #{tpu_custom_call.1} parent=55 // pred_check
          %p522 = pneg %p149
        $region62: #{tpu_custom_call.1} parent=55 // pred_check_branch
          %524 = sbr.rel (%p522) target = $region64
        $region63: #{tpu_custom_call.1} parent=55 // pred_region
          %526 = dma.done [#allocation6], 512
        $region64: #{tpu_custom_call.1} parent=55 // pred_fallthru
          _
        // Predicated region
        $region65: #{tpu_custom_call.1} parent=55 // pred_check
          %p527 = pneg %p175
        $region66: #{tpu_custom_call.1} parent=55 // pred_check_branch
          %529 = sbr.rel (%p527) target = $region68
        $region67: #{tpu_custom_call.1} parent=55 // pred_region
          %531 = dma.done [#allocation6], 512
        $region68: #{tpu_custom_call.1} parent=55 // pred_fallthru
          _
        // Predicated region
        $region69: #{tpu_custom_call.1} parent=55 // pred_check
          %p532 = pneg %p201
        $region70: #{tpu_custom_call.1} parent=55 // pred_check_branch
          %534 = sbr.rel (%p532) target = $region72
        $region71: #{tpu_custom_call.1} parent=55 // pred_region
          %536 = dma.done [#allocation9], 512
        $region72: #{tpu_custom_call.1} parent=55 // pred_fallthru
          _
        // Predicated region
        $region73: #{tpu_custom_call.1} parent=55 // pred_check
          %p537 = pneg %p227
        $region74: #{tpu_custom_call.1} parent=55 // pred_check_branch
          %539 = sbr.rel (%p537) target = $region76
        $region75: #{tpu_custom_call.1} parent=55 // pred_region
          %541 = dma.done [#allocation9], 512
        $region76: #{tpu_custom_call.1} parent=55 // pred_fallthru
          _
        %p542 = scmp.lt.s32.totalorder %s41, 1
        %s543 = scalar_select %p542, %s41, 1
        %s544 = scalar_lea.vmem %s0, %s543
        %p545 = pneg %p69
        %p546 = pneg %p66
        %s547 = smul.u32 4, %s40
        %p548 = scmp.lt.s32.totalorder %s41, 1
        %s549 = scalar_select %p548, %s41, 1
        %p550 = scmp.lt.s32.totalorder %s547, 3
        %s551 = scalar_select %p550, %s547, 3
        %s552 = smul.addr %s549, 4
        %s553 = sadd.s32 %s551, %s552
        %s554 = smul.addr %s553, 8
        %s555 = scalar_lea.vmem %s1, %s554
        %p556 = pneg %p97
        %p557 = pneg %p94
        %p558 = pneg %p123
        %p559 = pneg %p120
        %p560 = pneg %p149
        %p561 = pneg %p146
        %p562 = pneg %p175
        %p563 = pneg %p172
        %p564 = pneg %p201
        %p565 = pneg %p198
        %p566 = pneg %p227
        %p567 = pneg %p224
        %p568 = pneg %p248
        %p569 = pneg %p245
        %p570 = pneg %p269
        %p571 = pneg %p266
        %p572 = pneg %p297
        %p573 = pneg %p294
        %s574 = sand.u32 %s284, 1
        %s575 = scalar_lea.sflag [#allocation4], %s574
        %s576 = sand.u32 %s284, 1
        %s577 = smul.addr %s576, 32
        %s578 = scalar_lea.vmem [#allocation11], %s577
        %p579 = pneg %p325
        %p580 = pneg %p322
        %s581 = sand.u32 %s36, 1
        %s582 = scalar_lea.sflag [#allocation13], %s581
        %s583 = sand.u32 %s312, 1
        %s584 = smul.addr %s583, 32
        %s585 = scalar_lea.vmem [#allocation12], %s584
        %p586 = pneg %p353
        %p587 = pneg %p350
        %s588 = sand.u32 %s36, 1
        %s589 = scalar_lea.sflag [#allocation13], %s588
        %s590 = sand.u32 %s340, 1
        %s591 = smul.addr %s590, 32
        %s592 = scalar_lea.vmem [#allocation14], %s591
        %p593 = pneg %p381
        %p594 = pneg %p378
        %s595 = sand.u32 %s368, 1
        %s596 = scalar_lea.sflag [#allocation16], %s595
        %s597 = sand.u32 %s368, 1
        %s598 = smul.addr %s597, 32
        %s599 = scalar_lea.vmem [#allocation15], %s598
        %p600 = scmp.lt.s32.totalorder %s41, 1
        %s601 = scalar_select %p600, %s41, 1
        %s602 = scalar_lea.vmem %s0, %s601
        %s603 = smul.u32 4, %s40
        %p604 = scmp.lt.s32.totalorder %s41, 1
        %s605 = scalar_select %p604, %s41, 1
        %p606 = scmp.lt.s32.totalorder %s603, 3
        %s607 = scalar_select %p606, %s603, 3
        %s608 = smul.addr %s605, 4
        %s609 = sadd.s32 %s607, %s608
        %s610 = smul.addr %s609, 8
        %s611 = scalar_lea.vmem %s1, %s610
        %s612 = smul.u32 4, %s40
        %s613 = smul.u32 4, %s40
        %s614 = smul.u32 4, %s40
        %s615 = smul.u32 4, %s40
        %s616 = smul.u32 4, %s40
        %s617 = smul.u32 4, %s40
        %s618 = smul.u32 4, %s40
        %s619 = smul.u32 4, %s40
        %s620 = smul.u32 4, %s40
        %s621 = smul.u32 4, %s40
        %v622 = vld [vmem:[%s602] sm:$0x1]
        %v623 = vld [vmem:[%s611] sm:$0xff]
        %v624 = vld [vmem:[%s611 + $0x8] sm:$0xff]
        %v625 = vld [vmem:[%s611 + $0x10] sm:$0xff]
        %v626 = vld [vmem:[%s611 + $0x18] sm:$0xff]
        %v627 = vld [vmem:[#allocation2] sm:$0xff]
        %v628 = vld [vmem:[#allocation2 + $0x8] sm:$0xff]
        %v629 = vld [vmem:[#allocation2 + $0x10] sm:$0xff]
        %v630 = vld [vmem:[#allocation2 + $0x18] sm:$0xff]
        %v631 = vld [vmem:[#allocation8] sm:$0xff]
        %v632 = vld [vmem:[#allocation8 + $0x8] sm:$0xff]
        %v633 = vld [vmem:[#allocation8 + $0x10] sm:$0xff]
        %v634 = vld [vmem:[#allocation8 + $0x18] sm:$0xff]
        %v636 = vperm.slane %v622, 0
        %v638 = vmul.f32 %v636, %v631
        %v639 = vmul.f32 %v636, %v632
        %v640 = vmul.f32 %v636, %v633
        %v641 = vmul.f32 %v636, %v634
        %v642 = vadd.f32 %v627, %v638
        %v643 = vadd.f32 %v628, %v639
        %v644 = vadd.f32 %v629, %v640
        %v645 = vadd.f32 %v630, %v641
        %v646 = vld [vmem:[#allocation5] sm:$0xff]
        %v647 = vld [vmem:[#allocation5 + $0x8] sm:$0xff]
        %v648 = vld [vmem:[#allocation5 + $0x10] sm:$0xff]
        %v649 = vld [vmem:[#allocation5 + $0x18] sm:$0xff]
        %v650 = vld [vmem:[#allocation10] sm:$0xff]
        %v651 = vld [vmem:[#allocation10 + $0x8] sm:$0xff]
        %v652 = vld [vmem:[#allocation10 + $0x10] sm:$0xff]
        %v653 = vld [vmem:[#allocation10 + $0x18] sm:$0xff]
        %655 = vset.pattern.permute.xlu0 0
        %656 = vperm.xlu0 %655, %v623
        %v657 = vpop.permute.xlu0 %656
        %660 = vset.pattern.permute.xlu0 0
        %661 = vperm.xlu0 %660, %v624
        %v662 = vpop.permute.xlu0 %661
        %665 = vset.pattern.permute.xlu0 0
        %666 = vperm.xlu0 %665, %v625
        %v667 = vpop.permute.xlu0 %666
        %670 = vset.pattern.permute.xlu0 0
        %671 = vperm.xlu0 %670, %v626
        %v672 = vpop.permute.xlu0 %671
        %v674 = vmul.f32 %v657, %v650
        %v675 = vmul.f32 %v662, %v651
        %v676 = vmul.f32 %v667, %v652
        %v677 = vmul.f32 %v672, %v653
        %v678 = vadd.f32 %v646, %v674
        %v679 = vadd.f32 %v647, %v675
        %v680 = vadd.f32 %v648, %v676
        %v681 = vadd.f32 %v649, %v677
        %v682 = vld [vmem:[#allocation7] sm:$0xff]
        %v683 = vld [vmem:[#allocation7 + $0x8] sm:$0xff]
        %v684 = vld [vmem:[#allocation7 + $0x10] sm:$0xff]
        %v685 = vld [vmem:[#allocation7 + $0x18] sm:$0xff]
        %vm686 = vcmp.ne.f32.partialorder %v623, 0.0
        %vm687 = vcmp.ne.f32.partialorder %v624, 0.0
        %vm688 = vcmp.ne.f32.partialorder %v625, 0.0
        %vm689 = vcmp.ne.f32.partialorder %v626, 0.0
        %v690 = vsel %vm686, 1, 0
        %v691 = vsel %vm687, 1, 0
        %v692 = vsel %vm688, 1, 0
        %v693 = vsel %vm689, 1, 0
        %694 = vset.pattern.permute.xlu0 0
        %695 = vperm.xlu0 %694, %v690
        %v696 = vpop.permute.xlu0 %695
        %697 = vset.pattern.permute.xlu0 0
        %698 = vperm.xlu0 %697, %v691
        %v699 = vpop.permute.xlu0 %698
        %700 = vset.pattern.permute.xlu0 0
        %701 = vperm.xlu0 %700, %v692
        %v702 = vpop.permute.xlu0 %701
        %703 = vset.pattern.permute.xlu0 0
        %704 = vperm.xlu0 %703, %v693
        %v705 = vpop.permute.xlu0 %704
        %vm706 = vcmp.eq.s32.totalorder %v696, 1
        %vm707 = vcmp.eq.s32.totalorder %v699, 1
        %vm708 = vcmp.eq.s32.totalorder %v702, 1
        %vm709 = vcmp.eq.s32.totalorder %v705, 1
        %v710 = vsel %vm706, %v642, 0.0
        %v711 = vsel %vm707, %v643, 0.0
        %v712 = vsel %vm708, %v644, 0.0
        %v713 = vsel %vm709, %v645, 0.0
        %v714 = vadd.f32 %v682, %v710
        %v715 = vadd.f32 %v683, %v711
        %v716 = vadd.f32 %v684, %v712
        %v717 = vadd.f32 %v685, %v713
        %vm718 = vcmp.ne.f32.partialorder %v622, 0.0
        %v719 = vsel %vm718, 1, 0
        %v720 = vperm.slane %v719, 0
        %vm721 = vcmp.eq.s32.totalorder %v720, 1
        %v722 = vsel %vm721, %v678, 0.0
        %v723 = vsel %vm721, %v679, 0.0
        %v724 = vsel %vm721, %v680, 0.0
        %v725 = vsel %vm721, %v681, 0.0
        %v726 = vsub.f32 %v714, %v722
        %v727 = vsub.f32 %v715, %v723
        %v728 = vsub.f32 %v716, %v724
        %v729 = vsub.f32 %v717, %v725
        %v730 = vpack.c.bf16 %v727, %v726
        %v731 = vpack.c.bf16 %v729, %v728
        %v732 = vld [vmem:[%s7] sm:$0xf]
        %v733 = vld [vmem:[%s7 + $0x4] sm:$0xf]
        %v734 = vld [vmem:[%s7 + $0x8] sm:$0xf]
        %v735 = vld [vmem:[%s7 + $0xc] sm:$0xf]
        %v736 = vld [vmem:[%s7 + $0x10] sm:$0xf]
        %v737 = vld [vmem:[%s7 + $0x14] sm:$0xf]
        %v738 = vld [vmem:[%s7 + $0x18] sm:$0xf]
        %v739 = vld [vmem:[%s7 + $0x1c] sm:$0xf]
        %v740 = vld [vmem:[%s7 + $0x20] sm:$0xf]
        %v741 = vld [vmem:[%s7 + $0x24] sm:$0xf]
        %v742 = vld [vmem:[%s7 + $0x28] sm:$0xf]
        %v743 = vld [vmem:[%s7 + $0x2c] sm:$0xf]
        %v744 = vld [vmem:[%s7 + $0x30] sm:$0xf]
        %v745 = vld [vmem:[%s7 + $0x34] sm:$0xf]
        %v746 = vld [vmem:[%s7 + $0x38] sm:$0xf]
        %v747 = vld [vmem:[%s7 + $0x3c] sm:$0xf]
        %748 = vst [vmem:[%s585] sm:$0xff] %v642
        %749 = vst [vmem:[%s585 + $0x8] sm:$0xff] %v643
        %750 = vst [vmem:[%s585 + $0x10] sm:$0xff] %v644
        %751 = vst [vmem:[%s585 + $0x18] sm:$0xff] %v645
        %752 = vst [vmem:[%s592] sm:$0xff] %v678
        %753 = vst [vmem:[%s592 + $0x8] sm:$0xff] %v679
        %754 = vst [vmem:[%s592 + $0x10] sm:$0xff] %v680
        %755 = vst [vmem:[%s592 + $0x18] sm:$0xff] %v681
        %756 = vst [vmem:[%s599] sm:$0xff] %v726
        %757 = vst [vmem:[%s599 + $0x8] sm:$0xff] %v727
        %758 = vst [vmem:[%s599 + $0x10] sm:$0xff] %v728
        %759 = vst [vmem:[%s599 + $0x18] sm:$0xff] %v729
        %v760 = vld [vmem:[%s8] sm:$0x1]
        %v762 = vperm.slane %v760, 0
        %v780 = vunpack.c.l.b16 %v732
        %v781 = vunpack.c.l.b16 %v733
        %v782 = vunpack.c.l.b16 %v734
        %v783 = vunpack.c.l.b16 %v735
        %v784 = vunpack.c.l.b16 %v736
        %v785 = vunpack.c.l.b16 %v737
        %v786 = vunpack.c.l.b16 %v738
        %v787 = vunpack.c.l.b16 %v739
        %v788 = vunpack.c.l.b16 %v740
        %v789 = vunpack.c.l.b16 %v741
        %v790 = vunpack.c.l.b16 %v742
        %v791 = vunpack.c.l.b16 %v743
        %v792 = vunpack.c.l.b16 %v744
        %v793 = vunpack.c.l.b16 %v745
        %v794 = vunpack.c.l.b16 %v746
        %v795 = vunpack.c.l.b16 %v747
        %v796 = vpack.c.b16 %v781, %v780
        %v797 = vpack.c.b16 %v783, %v782
        %v798 = vpack.c.b16 %v785, %v784
        %v799 = vpack.c.b16 %v787, %v786
        %v800 = vpack.c.b16 %v789, %v788
        %v801 = vpack.c.b16 %v791, %v790
        %v802 = vpack.c.b16 %v793, %v792
        %v803 = vpack.c.b16 %v795, %v794
        %812 = vmatpush.bf16.msra.mxu0 %v803
        %813 = vmatpush.bf16.msra.mxu0 %v802
        %814 = vmatpush.bf16.msra.mxu0 %v801
        %815 = vmatpush.bf16.msra.mxu0 %v800
        %816 = vmatpush.bf16.msra.mxu0 %v799
        %817 = vmatpush.bf16.msra.mxu0 %v798
        %818 = vmatpush.bf16.msra.mxu0 %v797
        %819 = vmatpush.bf16.msra.mxu0 %v796
        %820 = vmatmul.bf16.gmra.mxu0 %v730
        %v821 = vpop.f32.mrf.mxu0
        %v822 = vadd.f32 %v762, %v821
        %v823 = vpop.f32.mrf.mxu0
        %v824 = vadd.f32 %v762, %v823
        %825 = vmatmul.bf16.gmra.mxu0 %v731
        %v826 = vpop.f32.mrf.mxu0
        %v827 = vadd.f32 %v762, %v826
        %v828 = vpop.f32.mrf.mxu0
        %v829 = vadd.f32 %v762, %v828
        %830 = vdwg.mxu0
        %831 = vst [vmem:[%s578] sm:$0xff] %v822
        %832 = vst [vmem:[%s578 + $0x8] sm:$0xff] %v824
        %833 = vst [vmem:[%s578 + $0x10] sm:$0xff] %v827
        %834 = vst [vmem:[%s578 + $0x18] sm:$0xff] %v829
        %s835 = sand.u32 %s284, 1
        %s836 = scalar_lea.sflag [#allocation4], %s835
        %s837 = sand.u32 %s284, 1
        %s838 = smul.addr %s837, 32
        %s839 = scalar_lea.vmem [#allocation11], %s838
        %s840 = sand.u32 %s36, 1
        %s841 = scalar_lea.sflag [#allocation13], %s840
        %s842 = sand.u32 %s312, 1
        %s843 = smul.addr %s842, 32
        %s844 = scalar_lea.vmem [#allocation12], %s843
        %s845 = sand.u32 %s36, 1
        %s846 = scalar_lea.sflag [#allocation13], %s845
        %s847 = sand.u32 %s340, 1
        %s848 = smul.addr %s847, 32
        %s849 = scalar_lea.vmem [#allocation14], %s848
        %s850 = sand.u32 %s368, 1
        %s851 = scalar_lea.sflag [#allocation16], %s850
        %s852 = sand.u32 %s368, 1
        %s853 = smul.addr %s852, 32
        %s854 = scalar_lea.vmem [#allocation15], %s853
        // Predicated region
        $region77: #{tpu_custom_call.1} parent=55 // pred_check
          %p855 = pneg %p294
        $region78: #{tpu_custom_call.1} parent=55 // pred_check_branch
          %857 = sbr.rel (%p855) target = $region80
        $region79: #{tpu_custom_call.1} parent=55 // pred_region
          %s858 = smul.u32 4, %s40
          %860 = vsyncadd %s836, 0
          %s861 = smul.addr %s41, 4
          %s862 = sadd.s32 %s858, %s861
          %s863 = smul.addr %s862, 8
          %s864 = scalar_lea.hbm %s9, %s863
          %s865 = sshll.u32 %s839, 4
          %s866 = int_to_ptr.vmem [resolvable:$true] %s865
          %s867 = sshll.u32 %s864, 4
          %s868 = int_to_ptr.hbm [resolvable:$true] %s867
          %873 = dma.vmem_to_hbm [thread:$0]  %s866, 512, %s868, %s836, 128, 128, 8
        $region80: #{tpu_custom_call.1} parent=55 // pred_fallthru
          _
        // Predicated region
        $region81: #{tpu_custom_call.1} parent=55 // pred_check
          %p874 = pneg %p322
        $region82: #{tpu_custom_call.1} parent=55 // pred_check_branch
          %876 = sbr.rel (%p874) target = $region84
        $region83: #{tpu_custom_call.1} parent=55 // pred_region
          %s877 = smul.u32 4, %s40
          %879 = vsyncadd %s841, 0
          %s880 = smul.addr %s41, 4
          %s881 = sadd.s32 %s877, %s880
          %s882 = smul.addr %s881, 8
          %s883 = scalar_lea.hbm %s10, %s882
          %s884 = sshll.u32 %s844, 4
          %s885 = int_to_ptr.vmem [resolvable:$true] %s884
          %s886 = sshll.u32 %s883, 4
          %s887 = int_to_ptr.hbm [resolvable:$true] %s886
          %892 = dma.vmem_to_hbm [thread:$0]  %s885, 512, %s887, %s841, 128, 128, 8
        $region84: #{tpu_custom_call.1} parent=55 // pred_fallthru
          _
        // Predicated region
        $region85: #{tpu_custom_call.1} parent=55 // pred_check
          %p893 = pneg %p350
        $region86: #{tpu_custom_call.1} parent=55 // pred_check_branch
          %895 = sbr.rel (%p893) target = $region88
        $region87: #{tpu_custom_call.1} parent=55 // pred_region
          %s896 = smul.u32 4, %s40
          %898 = vsyncadd %s846, 0
          %s899 = smul.addr %s41, 4
          %s900 = sadd.s32 %s896, %s899
          %s901 = smul.addr %s900, 8
          %s902 = scalar_lea.hbm %s11, %s901
          %s903 = sshll.u32 %s849, 4
          %s904 = int_to_ptr.vmem [resolvable:$true] %s903
          %s905 = sshll.u32 %s902, 4
          %s906 = int_to_ptr.hbm [resolvable:$true] %s905
          %911 = dma.vmem_to_hbm [thread:$0]  %s904, 512, %s906, %s846, 128, 128, 8
        $region88: #{tpu_custom_call.1} parent=55 // pred_fallthru
          _
        // Predicated region
        $region89: #{tpu_custom_call.1} parent=55 // pred_check
          %p912 = pneg %p378
        $region90: #{tpu_custom_call.1} parent=55 // pred_check_branch
          %914 = sbr.rel (%p912) target = $region92
        $region91: #{tpu_custom_call.1} parent=55 // pred_region
          %s915 = smul.u32 4, %s40
          %917 = vsyncadd %s851, 0
          %s918 = smul.addr %s41, 4
          %s919 = sadd.s32 %s915, %s918
          %s920 = smul.addr %s919, 8
          %s921 = scalar_lea.hbm %s12, %s920
          %s922 = sshll.u32 %s854, 4
          %s923 = int_to_ptr.vmem [resolvable:$true] %s922
          %s924 = sshll.u32 %s921, 4
          %s925 = int_to_ptr.hbm [resolvable:$true] %s924
          %930 = dma.vmem_to_hbm [thread:$0]  %s923, 512, %s925, %s851, 128, 128, 8
        $region92: #{tpu_custom_call.1} parent=55 // pred_fallthru
          _
      $region56: #{tpu_custom_call.1} parent=5 // pred_fallthru
        _
      %p931 = scmp.le.s32.totalorder 2, %s31
      // Predicated region
      $region93: #{tpu_custom_call.1} parent=5 // pred_check
        %p932 = pneg %p931
      $region94: #{tpu_custom_call.1} parent=5 // pred_check_branch
        %934 = sbr.rel (%p932) target = $region96
      $region95: #{tpu_custom_call.1} parent=5 // pred_region
        %s935 = ssub.s32 %s31, 2
        // Predicated region
        $region97: #{tpu_custom_call.1} parent=95 // pred_check
          %p936 = pneg %p300
        $region98: #{tpu_custom_call.1} parent=95 // pred_check_branch
          %938 = sbr.rel (%p936) target = $region100
        $region99: #{tpu_custom_call.1} parent=95 // pred_region
          %s939 = sand.u32 %s285, 1
          %s940 = scalar_lea.sflag [#allocation4], %s939
          %s941 = sand.u32 %s285, 1
          %s942 = smul.addr %s941, 32
          %s943 = scalar_lea.vmem [#allocation11], %s942
          %945 = dma.done %s940, 512
        $region100: #{tpu_custom_call.1} parent=95 // pred_fallthru
          _
        // Predicated region
        $region101: #{tpu_custom_call.1} parent=95 // pred_check
          %p946 = pneg %p328
        $region102: #{tpu_custom_call.1} parent=95 // pred_check_branch
          %948 = sbr.rel (%p946) target = $region104
        $region103: #{tpu_custom_call.1} parent=95 // pred_region
          %s949 = sand.u32 %s37, 1
          %s950 = scalar_lea.sflag [#allocation13], %s949
          %s951 = sand.u32 %s313, 1
          %s952 = smul.addr %s951, 32
          %s953 = scalar_lea.vmem [#allocation12], %s952
          %955 = dma.done %s950, 512
        $region104: #{tpu_custom_call.1} parent=95 // pred_fallthru
          _
        // Predicated region
        $region105: #{tpu_custom_call.1} parent=95 // pred_check
          %p956 = pneg %p356
        $region106: #{tpu_custom_call.1} parent=95 // pred_check_branch
          %958 = sbr.rel (%p956) target = $region108
        $region107: #{tpu_custom_call.1} parent=95 // pred_region
          %s959 = sand.u32 %s37, 1
          %s960 = scalar_lea.sflag [#allocation13], %s959
          %s961 = sand.u32 %s341, 1
          %s962 = smul.addr %s961, 32
          %s963 = scalar_lea.vmem [#allocation14], %s962
          %965 = dma.done %s960, 512
        $region108: #{tpu_custom_call.1} parent=95 // pred_fallthru
          _
        // Predicated region
        $region109: #{tpu_custom_call.1} parent=95 // pred_check
          %p966 = pneg %p384
        $region110: #{tpu_custom_call.1} parent=95 // pred_check_branch
          %968 = sbr.rel (%p966) target = $region112
        $region111: #{tpu_custom_call.1} parent=95 // pred_region
          %s969 = sand.u32 %s369, 1
          %s970 = scalar_lea.sflag [#allocation16], %s969
          %s971 = sand.u32 %s369, 1
          %s972 = smul.addr %s971, 32
          %s973 = scalar_lea.vmem [#allocation15], %s972
          %975 = dma.done %s970, 512
        $region112: #{tpu_custom_call.1} parent=95 // pred_fallthru
          _
      $region96: #{tpu_custom_call.1} parent=5 // pred_fallthru
        _
    $region6: #{tpu_custom_call.1} parent=1 // loop_footer
      %s35 = sadd.s32 1, %s31
    $region7: #{tpu_custom_call.1} parent=1 // loop_footer_branch
      %30 = sbr.rel target = $region3
    $region8: #{tpu_custom_call.1} parent=1 // loop_exit
      _
    %976 = vsyncpa [#allocation3], 1
    %s977 = scalar_lea.sflag [#allocation3], 1
    %978 = vsyncpa %s977, 1
    %979 = vsyncpa [#allocation6], 1
    %980 = vsyncpa [#allocation9], 1
    %981 = vsyncpa [#allocation4], 1
    %s982 = scalar_lea.sflag [#allocation4], 1
    %983 = vsyncpa %s982, 1
    %984 = vsyncpa [#allocation13], 1
    %s985 = scalar_lea.sflag [#allocation13], 1
    %986 = vsyncpa %s985, 1
    %987 = vsyncpa [#allocation16], 1
    %s988 = scalar_lea.sflag [#allocation16], 1
    %989 = vsyncpa %s988, 1

// kernel: tpu_custom_call.1
$region0: #{tpu_custom_call.1}
  #allocation0 [shape = 'u32[]', space=smem, size = 0x4, offset = 0x4, fixed_abs, tag = 'smem constant byte address 0x4 - core index']
  #allocation1 [shape = 'u32[72,128]{1,0:T(1,128)}', space=vmem, size = 0x9000, scoped, tag = 'internal scratch']
  %s0 = inlined_call_operand.vmem [shape: f32[2,1,128], index: 0, kind: input, shape index: {}]
  %s1 = inlined_call_operand.vmem [shape: f32[2,32,1], index: 1, kind: input, shape index: {}]
  %s2 = inlined_call_operand.hbm [shape: f32[32,128], index: 2, kind: input, shape index: {}]
  %s3 = inlined_call_operand.hbm [shape: f32[32,128], index: 3, kind: input, shape index: {}]
  %s4 = inlined_call_operand.hbm [shape: f32[32,128], index: 4, kind: input, shape index: {}]
  %s5 = inlined_call_operand.hbm [shape: f32[32,128], index: 5, kind: input, shape index: {}]
  %s6 = inlined_call_operand.hbm [shape: f32[32,128], index: 6, kind: input, shape index: {}]
  %s7 = inlined_call_operand.vmem [shape: bf16[128,128], index: 7, kind: input, shape index: {}]
  %s8 = inlined_call_operand.vmem [shape: f32[1,128], index: 8, kind: input, shape index: {}]
  %s9 = inlined_call_operand.hbm [shape: f32[2,32,128], index: 9, kind: output, shape index: {0}]
  %s10 = inlined_call_operand.hbm [shape: f32[2,32,128], index: 10, kind: output, shape index: {1}]
  %s11 = inlined_call_operand.hbm [shape: f32[2,32,128], index: 11, kind: output, shape index: {2}]
  %s12 = inlined_call_operand.hbm [shape: f32[2,32,128], index: 12, kind: output, shape index: {3}]
  %13 = xla_tuple %s9, %s10, %s11, %s12
  %s14 = sld [smem:[#allocation0]]
  $region113: #{tpu_custom_call.1} parent=0
    _
  %s16 = ssub.s32 1, %s14
  %s17 = scalar_select 0, %s16, %s14
  $region1: #{tpu_custom_call.1} parent=0
    #allocation2 [shape = 'u8[16384]{0}', space=vmem, size = 0x4000, scoped, tag = 'input window, operand 2, single buffered']
    #allocation3 [shape = 's32[2]{0}', space=sflag, size = 0x8, scoped, tag = 'scoped memory for tpu_custom_call.1']
    #allocation4 [shape = 's32[2]{0}', space=sflag, size = 0x8, scoped, tag = 'scoped memory for tpu_custom_call.1']
    #allocation5 [shape = 'u8[16384]{0}', space=vmem, size = 0x4000, scoped, tag = 'input window, operand 3, single buffered']
    #allocation6 [shape = 's32[1]{0}', space=sflag, size = 0x4, scoped, tag = 'scoped memory for tpu_custom_call.1']
    #allocation7 [shape = 'u8[16384]{0}', space=vmem, size = 0x4000, scoped, tag = 'input window, operand 4, single buffered']
    #allocation8 [shape = 'u8[16384]{0}', space=vmem, size = 0x4000, scoped, tag = 'input window, operand 5, single buffered']
    #allocation9 [shape = 's32[1]{0}', space=sflag, size = 0x4, scoped, tag = 'scoped memory for tpu_custom_call.1']
    #allocation10 [shape = 'u8[16384]{0}', space=vmem, size = 0x4000, scoped, tag = 'input window, operand 6, single buffered']
    #allocation11 [shape = 'u8[32768]{0}', space=vmem, size = 0x8000, scoped, tag = 'output window, operand 0']
    #allocation12 [shape = 'u8[32768]{0}', space=vmem, size = 0x8000, scoped, tag = 'output window, operand 1']
    #allocation13 [shape = 's32[2]{0}', space=sflag, size = 0x8, scoped, tag = 'scoped memory for tpu_custom_call.1']
    #allocation14 [shape = 'u8[32768]{0}', space=vmem, size = 0x8000, scoped, tag = 'output window, operand 2']
    #allocation15 [shape = 'u8[32768]{0}', space=vmem, size = 0x8000, scoped, tag = 'output window, operand 3']
    #allocation16 [shape = 's32[2]{0}', space=sflag, size = 0x8, scoped, tag = 'scoped memory for tpu_custom_call.1']
    %18 = vsyncpa [#allocation3], 0
    %19 = vsyncpa [#allocation6], 0
    %20 = vsyncpa [#allocation9], 0
    %21 = vsyncpa [#allocation4], 0
    %s22 = scalar_lea.sflag [#allocation4], 1
    %23 = vsyncpa %s22, 0
    %24 = vsyncpa [#allocation13], 0
    %s25 = scalar_lea.sflag [#allocation13], 1
    %26 = vsyncpa %s25, 0
    %27 = vsyncpa [#allocation16], 0
    %s28 = scalar_lea.sflag [#allocation16], 1
    %29 = vsyncpa %s28, 0
    loop: start=0, step=1, limit=4
    $region2: #{tpu_custom_call.1} parent=1 // loop_pre_header
      _
    $region3: #{tpu_custom_call.1} parent=1 // loop_header
      %s31 = sphi 0, %s35
      %p32 = scmp.ge.s32.totalorder %s31, 4
      %s38 = sphi 0, %s50
      %s39 = sphi 0, %s46
      %s40 = sphi 0, %s38
      %s41 = sphi 0, %s39
      %s42 = sphi 0, %s40
      %s43 = sphi 0, %s41
      %s53 = sphi 0, %s55
      %s56 = sphi 0, %s53
      %s57 = sphi 0, %s56
      %s73 = sphi 0, %s57
      %s81 = sphi 0, %s83
      %s84 = sphi 0, %s81
      %s85 = sphi 0, %s84
      %s101 = sphi 0, %s85
      %s107 = sphi 0, %s109
      %s110 = sphi 0, %s107
      %s111 = sphi 0, %s110
      %s127 = sphi 0, %s111
      %s133 = sphi 0, %s135
      %s136 = sphi 0, %s133
      %s137 = sphi 0, %s136
      %s153 = sphi 0, %s137
      %s159 = sphi 0, %s161
      %s162 = sphi 0, %s159
      %s163 = sphi 0, %s162
      %s179 = sphi 0, %s163
      %s185 = sphi 0, %s187
      %s188 = sphi 0, %s185
      %s189 = sphi 0, %s188
      %s205 = sphi 0, %s189
      %s211 = sphi 0, %s213
      %s214 = sphi 0, %s211
      %s215 = sphi 0, %s214
      %s231 = sphi 0, %s215
      %s235 = sphi 0, %s235
      %s237 = sphi 0, %s235
      %s238 = sphi 0, %s237
      %s252 = sphi 0, %s238
      %s256 = sphi 0, %s256
      %s258 = sphi 0, %s256
      %s259 = sphi 0, %s258
      %s273 = sphi 0, %s259
      %s281 = sphi 0, %s283
      %s284 = sphi 0, %s281
      %s285 = sphi 0, %s284
      %s301 = sphi 0, %s285
      %s309 = sphi 0, %s311
      %s312 = sphi 0, %s309
      %s313 = sphi 0, %s312
      %s329 = sphi 0, %s313
      %s337 = sphi 0, %s339
      %s340 = sphi 0, %s337
      %s341 = sphi 0, %s340
      %s357 = sphi 0, %s341
      %s365 = sphi 0, %s367
      %s368 = sphi 0, %s365
      %s369 = sphi 0, %s368
      %s385 = sphi 0, %s369
    $region4: #{tpu_custom_call.1} parent=1 // loop_header_branch
      %34 = sbr.rel (%p32) target = $region8
    $region5: #{tpu_custom_call.1} parent=1 // loop_body
      %s36 = ssub.s32 %s31, 1
      %s37 = ssub.s32 %s31, 2
      %s44 = sadd.s32 1, %s39
      %p45 = scmp.ge.s32.totalorder %s44, 2
      %s46 = scalar_select %p45, 0, %s44
      %s47 = sadd.s32 1, %s38
      %s48 = scalar_select %p45, %s47, %s38
      %p49 = scmp.ge.s32.totalorder %s48, 1
      %s50 = scalar_select %p49, 0, %s48
      %s51 = ssub.s32 %s39, %s46
      %p52 = scmp.eq.s32.totalorder %s51, 0
      %s54 = sadd.s32 %s53, 1
      %s55 = scalar_select %p52, %s53, %s54
      %p58 = pneg %p52
      %p59 = scmp.eq.s32.totalorder %s31, 1
      %p60 = por %p58, %p59
      %p61 = scmp.ne.s32.totalorder %s53, %s56
      %p62 = scmp.eq.s32.totalorder %s31, 0
      %p63 = por %p61, %p62
      %p64 = scmp.ne.s32.totalorder %s53, %s56
      %p65 = scmp.eq.s32.totalorder %s36, 1
      %p66 = por %p64, %p65
      %p67 = scmp.ne.s32.totalorder %s56, %s57
      %p68 = scmp.eq.s32.totalorder %s36, 0
      %p69 = por %p67, %p68
      %p70 = scmp.ne.s32.totalorder %s56, %s57
      %p71 = scmp.eq.s32.totalorder %s37, 1
      %p72 = por %p70, %p71
      %p74 = scmp.ne.s32.totalorder %s57, %s73
      %p75 = scmp.eq.s32.totalorder %s37, 0
      %p76 = por %p74, %p75
      %s77 = ssub.s32 %s39, %s46
      %s78 = ssub.s32 %s38, %s50
      %s79 = sor.u32 %s77, %s78
      %p80 = scmp.eq.s32.totalorder %s79, 0
      %s82 = sadd.s32 %s81, 1
      %s83 = scalar_select %p80, %s81, %s82
      %p86 = pneg %p80
      %p87 = scmp.eq.s32.totalorder %s31, 1
      %p88 = por %p86, %p87
      %p89 = scmp.ne.s32.totalorder %s81, %s84
      %p90 = scmp.eq.s32.totalorder %s31, 0
      %p91 = por %p89, %p90
      %p92 = scmp.ne.s32.totalorder %s81, %s84
      %p93 = scmp.eq.s32.totalorder %s36, 1
      %p94 = por %p92, %p93
      %p95 = scmp.ne.s32.totalorder %s84, %s85
      %p96 = scmp.eq.s32.totalorder %s36, 0
      %p97 = por %p95, %p96
      %p98 = scmp.ne.s32.totalorder %s84, %s85
      %p99 = scmp.eq.s32.totalorder %s37, 1
      %p100 = por %p98, %p99
      %p102 = scmp.ne.s32.totalorder %s85, %s101
      %p103 = scmp.eq.s32.totalorder %s37, 0
      %p104 = por %p102, %p103
      %s105 = ssub.s32 %s38, %s50
      %p106 = scmp.eq.s32.totalorder %s105, 0
      %s108 = sadd.s32 %s107, 1
      %s109 = scalar_select %p106, %s107, %s108
      %p112 = pneg %p106
      %p113 = scmp.eq.s32.totalorder %s31, 1
      %p114 = por %p112, %p113
      %p115 = scmp.ne.s32.totalorder %s107, %s110
      %p116 = scmp.eq.s32.totalorder %s31, 0
      %p117 = por %p115, %p116
      %p118 = scmp.ne.s32.totalorder %s107, %s110
      %p119 = scmp.eq.s32.totalorder %s36, 1
      %p120 = por %p118, %p119
      %p121 = scmp.ne.s32.totalorder %s110, %s111
      %p122 = scmp.eq.s32.totalorder %s36, 0
      %p123 = por %p121, %p122
      %p124 = scmp.ne.s32.totalorder %s110, %s111
      %p125 = scmp.eq.s32.totalorder %s37, 1
      %p126 = por %p124, %p125
      %p128 = scmp.ne.s32.totalorder %s111, %s127
      %p129 = scmp.eq.s32.totalorder %s37, 0
      %p130 = por %p128, %p129
      %s131 = ssub.s32 %s38, %s50
      %p132 = scmp.eq.s32.totalorder %s131, 0
      %s134 = sadd.s32 %s133, 1
      %s135 = scalar_select %p132, %s133, %s134
      %p138 = pneg %p132
      %p139 = scmp.eq.s32.totalorder %s31, 1
      %p140 = por %p138, %p139
      %p141 = scmp.ne.s32.totalorder %s133, %s136
      %p142 = scmp.eq.s32.totalorder %s31, 0
      %p143 = por %p141, %p142
      %p144 = scmp.ne.s32.totalorder %s133, %s136
      %p145 = scmp.eq.s32.totalorder %s36, 1
      %p146 = por %p144, %p145
      %p147 = scmp.ne.s32.totalorder %s136, %s137
      %p148 = scmp.eq.s32.totalorder %s36, 0
      %p149 = por %p147, %p148
      %p150 = scmp.ne.s32.totalorder %s136, %s137
      %p151 = scmp.eq.s32.totalorder %s37, 1
      %p152 = por %p150, %p151
      %p154 = scmp.ne.s32.totalorder %s137, %s153
      %p155 = scmp.eq.s32.totalorder %s37, 0
      %p156 = por %p154, %p155
      %s157 = ssub.s32 %s38, %s50
      %p158 = scmp.eq.s32.totalorder %s157, 0
      %s160 = sadd.s32 %s159, 1
      %s161 = scalar_select %p158, %s159, %s160
      %p164 = pneg %p158
      %p165 = scmp.eq.s32.totalorder %s31, 1
      %p166 = por %p164, %p165
      %p167 = scmp.ne.s32.totalorder %s159, %s162
      %p168 = scmp.eq.s32.totalorder %s31, 0
      %p169 = por %p167, %p168
      %p170 = scmp.ne.s32.totalorder %s159, %s162
      %p171 = scmp.eq.s32.totalorder %s36, 1
      %p172 = por %p170, %p171
      %p173 = scmp.ne.s32.totalorder %s162, %s163
      %p174 = scmp.eq.s32.totalorder %s36, 0
      %p175 = por %p173, %p174
      %p176 = scmp.ne.s32.totalorder %s162, %s163
      %p177 = scmp.eq.s32.totalorder %s37, 1
      %p178 = por %p176, %p177
      %p180 = scmp.ne.s32.totalorder %s163, %s179
      %p181 = scmp.eq.s32.totalorder %s37, 0
      %p182 = por %p180, %p181
      %s183 = ssub.s32 %s38, %s50
      %p184 = scmp.eq.s32.totalorder %s183, 0
      %s186 = sadd.s32 %s185, 1
      %s187 = scalar_select %p184, %s185, %s186
      %p190 = pneg %p184
      %p191 = scmp.eq.s32.totalorder %s31, 1
      %p192 = por %p190, %p191
      %p193 = scmp.ne.s32.totalorder %s185, %s188
      %p194 = scmp.eq.s32.totalorder %s31, 0
      %p195 = por %p193, %p194
      %p196 = scmp.ne.s32.totalorder %s185, %s188
      %p197 = scmp.eq.s32.totalorder %s36, 1
      %p198 = por %p196, %p197
      %p199 = scmp.ne.s32.totalorder %s188, %s189
      %p200 = scmp.eq.s32.totalorder %s36, 0
      %p201 = por %p199, %p200
      %p202 = scmp.ne.s32.totalorder %s188, %s189
      %p203 = scmp.eq.s32.totalorder %s37, 1
      %p204 = por %p202, %p203
      %p206 = scmp.ne.s32.totalorder %s189, %s205
      %p207 = scmp.eq.s32.totalorder %s37, 0
      %p208 = por %p206, %p207
      %s209 = ssub.s32 %s38, %s50
      %p210 = scmp.eq.s32.totalorder %s209, 0
      %s212 = sadd.s32 %s211, 1
      %s213 = scalar_select %p210, %s211, %s212
      %p216 = pneg %p210
      %p217 = scmp.eq.s32.totalorder %s31, 1
      %p218 = por %p216, %p217
      %p219 = scmp.ne.s32.totalorder %s211, %s214
      %p220 = scmp.eq.s32.totalorder %s31, 0
      %p221 = por %p219, %p220
      %p222 = scmp.ne.s32.totalorder %s211, %s214
      %p223 = scmp.eq.s32.totalorder %s36, 1
      %p224 = por %p222, %p223
      %p225 = scmp.ne.s32.totalorder %s214, %s215
      %p226 = scmp.eq.s32.totalorder %s36, 0
      %p227 = por %p225, %p226
      %p228 = scmp.ne.s32.totalorder %s214, %s215
      %p229 = scmp.eq.s32.totalorder %s37, 1
      %p230 = por %p228, %p229
      %p232 = scmp.ne.s32.totalorder %s215, %s231
      %p233 = scmp.eq.s32.totalorder %s37, 0
      %p234 = por %p232, %p233
      %s236 = sadd.s32 %s235, 1
      %p239 = scmp.eq.s32.totalorder %s31, 1
      %p240 = scmp.ne.s32.totalorder %s235, %s237
      %p241 = scmp.eq.s32.totalorder %s31, 0
      %p242 = por %p240, %p241
      %p243 = scmp.ne.s32.totalorder %s235, %s237
      %p244 = scmp.eq.s32.totalorder %s36, 1
      %p245 = por %p243, %p244
      %p246 = scmp.ne.s32.totalorder %s237, %s238
      %p247 = scmp.eq.s32.totalorder %s36, 0
      %p248 = por %p246, %p247
      %p249 = scmp.ne.s32.totalorder %s237, %s238
      %p250 = scmp.eq.s32.totalorder %s37, 1
      %p251 = por %p249, %p250
      %p253 = scmp.ne.s32.totalorder %s238, %s252
      %p254 = scmp.eq.s32.totalorder %s37, 0
      %p255 = por %p253, %p254
      %s257 = sadd.s32 %s256, 1
      %p260 = scmp.eq.s32.totalorder %s31, 1
      %p261 = scmp.ne.s32.totalorder %s256, %s258
      %p262 = scmp.eq.s32.totalorder %s31, 0
      %p263 = por %p261, %p262
      %p264 = scmp.ne.s32.totalorder %s256, %s258
      %p265 = scmp.eq.s32.totalorder %s36, 1
      %p266 = por %p264, %p265
      %p267 = scmp.ne.s32.totalorder %s258, %s259
      %p268 = scmp.eq.s32.totalorder %s36, 0
      %p269 = por %p267, %p268
      %p270 = scmp.ne.s32.totalorder %s258, %s259
      %p271 = scmp.eq.s32.totalorder %s37, 1
      %p272 = por %p270, %p271
      %p274 = scmp.ne.s32.totalorder %s259, %s273
      %p275 = scmp.eq.s32.totalorder %s37, 0
      %p276 = por %p274, %p275
      %s277 = ssub.s32 %s39, %s46
      %s278 = ssub.s32 %s38, %s50
      %s279 = sor.u32 %s277, %s278
      %p280 = scmp.eq.s32.totalorder %s279, 0
      %s282 = sadd.s32 %s281, 1
      %s283 = scalar_select %p280, %s281, %s282
      %p286 = pneg %p280
      %p287 = scmp.eq.s32.totalorder %s31, 1
      %p288 = por %p286, %p287
      %p289 = scmp.ne.s32.totalorder %s281, %s284
      %p290 = scmp.eq.s32.totalorder %s31, 0
      %p291 = por %p289, %p290
      %p292 = scmp.ne.s32.totalorder %s281, %s284
      %p293 = scmp.eq.s32.totalorder %s36, 1
      %p294 = por %p292, %p293
      %p295 = scmp.ne.s32.totalorder %s284, %s285
      %p296 = scmp.eq.s32.totalorder %s36, 0
      %p297 = por %p295, %p296
      %p298 = scmp.ne.s32.totalorder %s284, %s285
      %p299 = scmp.eq.s32.totalorder %s37, 1
      %p300 = por %p298, %p299
      %p302 = scmp.ne.s32.totalorder %s285, %s301
      %p303 = scmp.eq.s32.totalorder %s37, 0
      %p304 = por %p302, %p303
      %s305 = ssub.s32 %s39, %s46
      %s306 = ssub.s32 %s38, %s50
      %s307 = sor.u32 %s305, %s306
      %p308 = scmp.eq.s32.totalorder %s307, 0
      %s310 = sadd.s32 %s309, 1
      %s311 = scalar_select %p308, %s309, %s310
      %p314 = pneg %p308
      %p315 = scmp.eq.s32.totalorder %s31, 1
      %p316 = por %p314, %p315
      %p317 = scmp.ne.s32.totalorder %s309, %s312
      %p318 = scmp.eq.s32.totalorder %s31, 0
      %p319 = por %p317, %p318
      %p320 = scmp.ne.s32.totalorder %s309, %s312
      %p321 = scmp.eq.s32.totalorder %s36, 1
      %p322 = por %p320, %p321
      %p323 = scmp.ne.s32.totalorder %s312, %s313
      %p324 = scmp.eq.s32.totalorder %s36, 0
      %p325 = por %p323, %p324
      %p326 = scmp.ne.s32.totalorder %s312, %s313
      %p327 = scmp.eq.s32.totalorder %s37, 1
      %p328 = por %p326, %p327
      %p330 = scmp.ne.s32.totalorder %s313, %s329
      %p331 = scmp.eq.s32.totalorder %s37, 0
      %p332 = por %p330, %p331
      %s333 = ssub.s32 %s39, %s46
      %s334 = ssub.s32 %s38, %s50
      %s335 = sor.u32 %s333, %s334
      %p336 = scmp.eq.s32.totalorder %s335, 0
      %s338 = sadd.s32 %s337, 1
      %s339 = scalar_select %p336, %s337, %s338
      %p342 = pneg %p336
      %p343 = scmp.eq.s32.totalorder %s31, 1
      %p344 = por %p342, %p343
      %p345 = scmp.ne.s32.totalorder %s337, %s340
      %p346 = scmp.eq.s32.totalorder %s31, 0
      %p347 = por %p345, %p346
      %p348 = scmp.ne.s32.totalorder %s337, %s340
      %p349 = scmp.eq.s32.totalorder %s36, 1
      %p350 = por %p348, %p349
      %p351 = scmp.ne.s32.totalorder %s340, %s341
      %p352 = scmp.eq.s32.totalorder %s36, 0
      %p353 = por %p351, %p352
      %p354 = scmp.ne.s32.totalorder %s340, %s341
      %p355 = scmp.eq.s32.totalorder %s37, 1
      %p356 = por %p354, %p355
      %p358 = scmp.ne.s32.totalorder %s341, %s357
      %p359 = scmp.eq.s32.totalorder %s37, 0
      %p360 = por %p358, %p359
      %s361 = ssub.s32 %s39, %s46
      %s362 = ssub.s32 %s38, %s50
      %s363 = sor.u32 %s361, %s362
      %p364 = scmp.eq.s32.totalorder %s363, 0
      %s366 = sadd.s32 %s365, 1
      %s367 = scalar_select %p364, %s365, %s366
      %p370 = pneg %p364
      %p371 = scmp.eq.s32.totalorder %s31, 1
      %p372 = por %p370, %p371
      %p373 = scmp.ne.s32.totalorder %s365, %s368
      %p374 = scmp.eq.s32.totalorder %s31, 0
      %p375 = por %p373, %p374
      %p376 = scmp.ne.s32.totalorder %s365, %s368
      %p377 = scmp.eq.s32.totalorder %s36, 1
      %p378 = por %p376, %p377
      %p379 = scmp.ne.s32.totalorder %s368, %s369
      %p380 = scmp.eq.s32.totalorder %s36, 0
      %p381 = por %p379, %p380
      %p382 = scmp.ne.s32.totalorder %s368, %s369
      %p383 = scmp.eq.s32.totalorder %s37, 1
      %p384 = por %p382, %p383
      %p386 = scmp.ne.s32.totalorder %s369, %s385
      %p387 = scmp.eq.s32.totalorder %s37, 0
      %p388 = por %p386, %p387
      %p389 = scmp.le.s32.totalorder 1, %s31
      %p390 = scmp.lt.s32.totalorder %s31, 3
      %p391 = pnand %p389, %p390
      %p392 = pneg %p391
      // Predicated region
      $region9: #{tpu_custom_call.1} parent=5 // pred_check
        _
      $region10: #{tpu_custom_call.1} parent=5 // pred_check_branch
        %394 = sbr.rel (%p391) target = $region12
      $region11: #{tpu_custom_call.1} parent=5 // pred_region
        %s395 = ssub.s32 %s31, 1
        // Predicated region
        $region13: #{tpu_custom_call.1} parent=11 // pred_check
          %p396 = pneg %p123
        $region14: #{tpu_custom_call.1} parent=11 // pred_check_branch
          %398 = sbr.rel (%p396) target = $region16
        $region15: #{tpu_custom_call.1} parent=11 // pred_region
          %s399 = smul.u32 4, %s40
          %401 = vsyncadd [#allocation3], 0
          %s402 = smul.addr %s399, 8
          %s403 = scalar_lea.hbm %s2, %s402
          %s404 = sshll.u32 %s403, 4
          %s405 = int_to_ptr.hbm [resolvable:$true] %s404
          %s406 = sshll.u32 [#allocation2], 4
          %s407 = int_to_ptr.vmem [resolvable:$true] %s406
          %412 = dma.hbm_to_vmem [thread:$0]  %s405, 512, %s407, [#allocation3], 128, 128, 8
        $region16: #{tpu_custom_call.1} parent=11 // pred_fallthru
          _
        // Predicated region
        $region17: #{tpu_custom_call.1} parent=11 // pred_check
          %p413 = pneg %p149
        $region18: #{tpu_custom_call.1} parent=11 // pred_check_branch
          %415 = sbr.rel (%p413) target = $region20
        $region19: #{tpu_custom_call.1} parent=11 // pred_region
          %s416 = smul.u32 4, %s40
          %418 = vsyncadd [#allocation6], 0
          %s419 = smul.addr %s416, 8
          %s420 = scalar_lea.hbm %s3, %s419
          %s421 = sshll.u32 %s420, 4
          %s422 = int_to_ptr.hbm [resolvable:$true] %s421
          %s423 = sshll.u32 [#allocation5], 4
          %s424 = int_to_ptr.vmem [resolvable:$true] %s423
          %429 = dma.hbm_to_vmem [thread:$0]  %s422, 512, %s424, [#allocation6], 128, 128, 8
        $region20: #{tpu_custom_call.1} parent=11 // pred_fallthru
          _
        // Predicated region
        $region21: #{tpu_custom_call.1} parent=11 // pred_check
          %p430 = pneg %p175
        $region22: #{tpu_custom_call.1} parent=11 // pred_check_branch
          %432 = sbr.rel (%p430) target = $region24
        $region23: #{tpu_custom_call.1} parent=11 // pred_region
          %s433 = smul.u32 4, %s40
          %435 = vsyncadd [#allocation6], 0
          %s436 = smul.addr %s433, 8
          %s437 = scalar_lea.hbm %s4, %s436
          %s438 = sshll.u32 %s437, 4
          %s439 = int_to_ptr.hbm [resolvable:$true] %s438
          %s440 = sshll.u32 [#allocation7], 4
          %s441 = int_to_ptr.vmem [resolvable:$true] %s440
          %446 = dma.hbm_to_vmem [thread:$0]  %s439, 512, %s441, [#allocation6], 128, 128, 8
        $region24: #{tpu_custom_call.1} parent=11 // pred_fallthru
          _
        // Predicated region
        $region25: #{tpu_custom_call.1} parent=11 // pred_check
          %p447 = pneg %p201
        $region26: #{tpu_custom_call.1} parent=11 // pred_check_branch
          %449 = sbr.rel (%p447) target = $region28
        $region27: #{tpu_custom_call.1} parent=11 // pred_region
          %s450 = smul.u32 4, %s40
          %452 = vsyncadd [#allocation9], 0
          %s453 = smul.addr %s450, 8
          %s454 = scalar_lea.hbm %s5, %s453
          %s455 = sshll.u32 %s454, 4
          %s456 = int_to_ptr.hbm [resolvable:$true] %s455
          %s457 = sshll.u32 [#allocation8], 4
          %s458 = int_to_ptr.vmem [resolvable:$true] %s457
          %463 = dma.hbm_to_vmem [thread:$0]  %s456, 512, %s458, [#allocation9], 128, 128, 8
        $region28: #{tpu_custom_call.1} parent=11 // pred_fallthru
          _
        // Predicated region
        $region29: #{tpu_custom_call.1} parent=11 // pred_check
          %p464 = pneg %p227
        $region30: #{tpu_custom_call.1} parent=11 // pred_check_branch
          %466 = sbr.rel (%p464) target = $region32
        $region31: #{tpu_custom_call.1} parent=11 // pred_region
          %s467 = smul.u32 4, %s40
          %469 = vsyncadd [#allocation9], 0
          %s470 = smul.addr %s467, 8
          %s471 = scalar_lea.hbm %s6, %s470
          %s472 = sshll.u32 %s471, 4
          %s473 = int_to_ptr.hbm [resolvable:$true] %s472
          %s474 = sshll.u32 [#allocation10], 4
          %s475 = int_to_ptr.vmem [resolvable:$true] %s474
          %480 = dma.hbm_to_vmem [thread:$0]  %s473, 512, %s475, [#allocation9], 128, 128, 8
        $region32: #{tpu_custom_call.1} parent=11 // pred_fallthru
          _
        // Predicated region
        $region33: #{tpu_custom_call.1} parent=11 // pred_check
          %p481 = pneg %p248
        $region34: #{tpu_custom_call.1} parent=11 // pred_check_branch
          %483 = sbr.rel (%p481) target = $region36
        $region35: #{tpu_custom_call.1} parent=11 // pred_region
          _
        $region36: #{tpu_custom_call.1} parent=11 // pred_fallthru
          _
        // Predicated region
        $region37: #{tpu_custom_call.1} parent=11 // pred_check
          %p484 = pneg %p269
        $region38: #{tpu_custom_call.1} parent=11 // pred_check_branch
          %486 = sbr.rel (%p484) target = $region40
        $region39: #{tpu_custom_call.1} parent=11 // pred_region
          _
        $region40: #{tpu_custom_call.1} parent=11 // pred_fallthru
          _
      $region12: #{tpu_custom_call.1} parent=5 // pred_fallthru
        _
      %p487 = scmp.lt.s32.totalorder %s31, 2
      // Predicated region
      $region41: #{tpu_custom_call.1} parent=5 // pred_check
        %p488 = pneg %p487
      $region42: #{tpu_custom_call.1} parent=5 // pred_check_branch
        %490 = sbr.rel (%p488) target = $region44
      $region43: #{tpu_custom_call.1} parent=5 // pred_region
        // Predicated region
        $region45: #{tpu_custom_call.1} parent=43 // pred_check
          %p491 = pneg %p63
        $region46: #{tpu_custom_call.1} parent=43 // pred_check_branch
          %493 = sbr.rel (%p491) target = $region48
        $region47: #{tpu_custom_call.1} parent=43 // pred_region
          %p494 = scmp.lt.s32.totalorder %s39, 1
          %s495 = scalar_select %p494, %s39, 1
          %s496 = scalar_lea.vmem %s0, %s495
        $region48: #{tpu_custom_call.1} parent=43 // pred_fallthru
          _
        // Predicated region
        $region49: #{tpu_custom_call.1} parent=43 // pred_check
          %p497 = pneg %p91
        $region50: #{tpu_custom_call.1} parent=43 // pred_check_branch
          %499 = sbr.rel (%p497) target = $region52
        $region51: #{tpu_custom_call.1} parent=43 // pred_region
          %s500 = smul.u32 4, %s38
          %p501 = scmp.lt.s32.totalorder %s39, 1
          %s502 = scalar_select %p501, %s39, 1
          %p503 = scmp.lt.s32.totalorder %s500, 3
          %s504 = scalar_select %p503, %s500, 3
          %s505 = smul.addr %s502, 4
          %s506 = sadd.s32 %s504, %s505
          %s507 = smul.addr %s506, 8
          %s508 = scalar_lea.vmem %s1, %s507
          %s509 = smul.u32 4, %s38
        $region52: #{tpu_custom_call.1} parent=43 // pred_fallthru
          _
      $region44: #{tpu_custom_call.1} parent=5 // pred_fallthru
        _
      %p510 = scmp.le.s32.totalorder 1, %s31
      %p511 = scmp.lt.s32.totalorder %s31, 3
      %p512 = pnand %p510, %p511
      %p513 = pneg %p512
      // Predicated region
      $region53: #{tpu_custom_call.1} parent=5 // pred_check
        _
      $region54: #{tpu_custom_call.1} parent=5 // pred_check_branch
        %515 = sbr.rel (%p512) target = $region56
      $region55: #{tpu_custom_call.1} parent=5 // pred_region
        %s516 = ssub.s32 %s31, 1
        // Predicated region
        $region57: #{tpu_custom_call.1} parent=55 // pred_check
          %p517 = pneg %p123
        $region58: #{tpu_custom_call.1} parent=55 // pred_check_branch
          %519 = sbr.rel (%p517) target = $region60
        $region59: #{tpu_custom_call.1} parent=55 // pred_region
          %521 = dma.done [#allocation3], 512
        $region60: #{tpu_custom_call.1} parent=55 // pred_fallthru
          _
        // Predicated region
        $region61: #{tpu_custom_call.1} parent=55 // pred_check
          %p522 = pneg %p149
        $region62: #{tpu_custom_call.1} parent=55 // pred_check_branch
          %524 = sbr.rel (%p522) target = $region64
        $region63: #{tpu_custom_call.1} parent=55 // pred_region
          %526 = dma.done [#allocation6], 512
        $region64: #{tpu_custom_call.1} parent=55 // pred_fallthru
          _
        // Predicated region
        $region65: #{tpu_custom_call.1} parent=55 // pred_check
          %p527 = pneg %p175
        $region66: #{tpu_custom_call.1} parent=55 // pred_check_branch
          %529 = sbr.rel (%p527) target = $region68
        $region67: #{tpu_custom_call.1} parent=55 // pred_region
          %531 = dma.done [#allocation6], 512
        $region68: #{tpu_custom_call.1} parent=55 // pred_fallthru
          _
        // Predicated region
        $region69: #{tpu_custom_call.1} parent=55 // pred_check
          %p532 = pneg %p201
        $region70: #{tpu_custom_call.1} parent=55 // pred_check_branch
          %534 = sbr.rel (%p532) target = $region72
        $region71: #{tpu_custom_call.1} parent=55 // pred_region
          %536 = dma.done [#allocation9], 512
        $region72: #{tpu_custom_call.1} parent=55 // pred_fallthru
          _
        // Predicated region
        $region73: #{tpu_custom_call.1} parent=55 // pred_check
          %p537 = pneg %p227
        $region74: #{tpu_custom_call.1} parent=55 // pred_check_branch
          %539 = sbr.rel (%p537) target = $region76
        $region75: #{tpu_custom_call.1} parent=55 // pred_region
          %541 = dma.done [#allocation9], 512
        $region76: #{tpu_custom_call.1} parent=55 // pred_fallthru
          _
        %p542 = scmp.lt.s32.totalorder %s41, 1
        %s543 = scalar_select %p542, %s41, 1
        %s544 = scalar_lea.vmem %s0, %s543
        %p545 = pneg %p69
        %p546 = pneg %p66
        %s547 = smul.u32 4, %s40
        %p548 = scmp.lt.s32.totalorder %s41, 1
        %s549 = scalar_select %p548, %s41, 1
        %p550 = scmp.lt.s32.totalorder %s547, 3
        %s551 = scalar_select %p550, %s547, 3
        %s552 = smul.addr %s549, 4
        %s553 = sadd.s32 %s551, %s552
        %s554 = smul.addr %s553, 8
        %s555 = scalar_lea.vmem %s1, %s554
        %p556 = pneg %p97
        %p557 = pneg %p94
        %p558 = pneg %p123
        %p559 = pneg %p120
        %p560 = pneg %p149
        %p561 = pneg %p146
        %p562 = pneg %p175
        %p563 = pneg %p172
        %p564 = pneg %p201
        %p565 = pneg %p198
        %p566 = pneg %p227
        %p567 = pneg %p224
        %p568 = pneg %p248
        %p569 = pneg %p245
        %p570 = pneg %p269
        %p571 = pneg %p266
        %p572 = pneg %p297
        %p573 = pneg %p294
        %s574 = sand.u32 %s284, 1
        %s575 = scalar_lea.sflag [#allocation4], %s574
        %s576 = sand.u32 %s284, 1
        %s577 = smul.addr %s576, 32
        %s578 = scalar_lea.vmem [#allocation11], %s577
        %p579 = pneg %p325
        %p580 = pneg %p322
        %s581 = sand.u32 %s36, 1
        %s582 = scalar_lea.sflag [#allocation13], %s581
        %s583 = sand.u32 %s312, 1
        %s584 = smul.addr %s583, 32
        %s585 = scalar_lea.vmem [#allocation12], %s584
        %p586 = pneg %p353
        %p587 = pneg %p350
        %s588 = sand.u32 %s36, 1
        %s589 = scalar_lea.sflag [#allocation13], %s588
        %s590 = sand.u32 %s340, 1
        %s591 = smul.addr %s590, 32
        %s592 = scalar_lea.vmem [#allocation14], %s591
        %p593 = pneg %p381
        %p594 = pneg %p378
        %s595 = sand.u32 %s368, 1
        %s596 = scalar_lea.sflag [#allocation16], %s595
        %s597 = sand.u32 %s368, 1
        %s598 = smul.addr %s597, 32
        %s599 = scalar_lea.vmem [#allocation15], %s598
        %p600 = scmp.lt.s32.totalorder %s41, 1
        %s601 = scalar_select %p600, %s41, 1
        %s602 = scalar_lea.vmem %s0, %s601
        %s603 = smul.u32 4, %s40
        %p604 = scmp.lt.s32.totalorder %s41, 1
        %s605 = scalar_select %p604, %s41, 1
        %p606 = scmp.lt.s32.totalorder %s603, 3
        %s607 = scalar_select %p606, %s603, 3
        %s608 = smul.addr %s605, 4
        %s609 = sadd.s32 %s607, %s608
        %s610 = smul.addr %s609, 8
        %s611 = scalar_lea.vmem %s1, %s610
        %s612 = smul.u32 4, %s40
        %s613 = smul.u32 4, %s40
        %s614 = smul.u32 4, %s40
        %s615 = smul.u32 4, %s40
        %s616 = smul.u32 4, %s40
        %s617 = smul.u32 4, %s40
        %s618 = smul.u32 4, %s40
        %s619 = smul.u32 4, %s40
        %s620 = smul.u32 4, %s40
        %s621 = smul.u32 4, %s40
        %v622 = vld [vmem:[%s602] sm:$0x1]
        %v623 = vld [vmem:[%s611] sm:$0xff]
        %v624 = vld [vmem:[%s611 + $0x8] sm:$0xff]
        %v625 = vld [vmem:[%s611 + $0x10] sm:$0xff]
        %v626 = vld [vmem:[%s611 + $0x18] sm:$0xff]
        %v627 = vld [vmem:[#allocation2] sm:$0xff]
        %v628 = vld [vmem:[#allocation2 + $0x8] sm:$0xff]
        %v629 = vld [vmem:[#allocation2 + $0x10] sm:$0xff]
        %v630 = vld [vmem:[#allocation2 + $0x18] sm:$0xff]
        %v631 = vld [vmem:[#allocation8] sm:$0xff]
        %v632 = vld [vmem:[#allocation8 + $0x8] sm:$0xff]
        %v633 = vld [vmem:[#allocation8 + $0x10] sm:$0xff]
        %v634 = vld [vmem:[#allocation8 + $0x18] sm:$0xff]
        %v636 = vperm.slane %v622, 0
        %v638 = vmul.f32 %v636, %v631
        %v639 = vmul.f32 %v636, %v632
        %v640 = vmul.f32 %v636, %v633
        %v641 = vmul.f32 %v636, %v634
        %v642 = vadd.f32 %v627, %v638
        %v643 = vadd.f32 %v628, %v639
        %v644 = vadd.f32 %v629, %v640
        %v645 = vadd.f32 %v630, %v641
        %v646 = vld [vmem:[#allocation5] sm:$0xff]
        %v647 = vld [vmem:[#allocation5 + $0x8] sm:$0xff]
        %v648 = vld [vmem:[#allocation5 + $0x10] sm:$0xff]
        %v649 = vld [vmem:[#allocation5 + $0x18] sm:$0xff]
        %v650 = vld [vmem:[#allocation10] sm:$0xff]
        %v651 = vld [vmem:[#allocation10 + $0x8] sm:$0xff]
        %v652 = vld [vmem:[#allocation10 + $0x10] sm:$0xff]
        %v653 = vld [vmem:[#allocation10 + $0x18] sm:$0xff]
        %655 = vset.pattern.permute.xlu0 0
        %656 = vperm.xlu0 %655, %v623
        %v657 = vpop.permute.xlu0 %656
        %660 = vset.pattern.permute.xlu0 0
        %661 = vperm.xlu0 %660, %v624
        %v662 = vpop.permute.xlu0 %661
        %665 = vset.pattern.permute.xlu0 0
        %666 = vperm.xlu0 %665, %v625
        %v667 = vpop.permute.xlu0 %666
        %670 = vset.pattern.permute.xlu0 0
        %671 = vperm.xlu0 %670, %v626
        %v672 = vpop.permute.xlu0 %671
        %v674 = vmul.f32 %v657, %v650
        %v675 = vmul.f32 %v662, %v651
        %v676 = vmul.f32 %v667, %v652
        %v677 = vmul.f32 %v672, %v653
        %v678 = vadd.f32 %v646, %v674
        %v679 = vadd.f32 %v647, %v675
        %v680 = vadd.f32 %v648, %v676
        %v681 = vadd.f32 %v649, %v677
        %v682 = vld [vmem:[#allocation7] sm:$0xff]
        %v683 = vld [vmem:[#allocation7 + $0x8] sm:$0xff]
        %v684 = vld [vmem:[#allocation7 + $0x10] sm:$0xff]
        %v685 = vld [vmem:[#allocation7 + $0x18] sm:$0xff]
        %vm686 = vcmp.ne.f32.partialorder %v623, 0.0
        %vm687 = vcmp.ne.f32.partialorder %v624, 0.0
        %vm688 = vcmp.ne.f32.partialorder %v625, 0.0
        %vm689 = vcmp.ne.f32.partialorder %v626, 0.0
        %v690 = vsel %vm686, 1, 0
        %v691 = vsel %vm687, 1, 0
        %v692 = vsel %vm688, 1, 0
        %v693 = vsel %vm689, 1, 0
        %694 = vset.pattern.permute.xlu0 0
        %695 = vperm.xlu0 %694, %v690
        %v696 = vpop.permute.xlu0 %695
        %697 = vset.pattern.permute.xlu0 0
        %698 = vperm.xlu0 %697, %v691
        %v699 = vpop.permute.xlu0 %698
        %700 = vset.pattern.permute.xlu0 0
        %701 = vperm.xlu0 %700, %v692
        %v702 = vpop.permute.xlu0 %701
        %703 = vset.pattern.permute.xlu0 0
        %704 = vperm.xlu0 %703, %v693
        %v705 = vpop.permute.xlu0 %704
        %vm706 = vcmp.eq.s32.totalorder %v696, 1
        %vm707 = vcmp.eq.s32.totalorder %v699, 1
        %vm708 = vcmp.eq.s32.totalorder %v702, 1
        %vm709 = vcmp.eq.s32.totalorder %v705, 1
        %v710 = vsel %vm706, %v642, 0.0
        %v711 = vsel %vm707, %v643, 0.0
        %v712 = vsel %vm708, %v644, 0.0
        %v713 = vsel %vm709, %v645, 0.0
        %v714 = vadd.f32 %v682, %v710
        %v715 = vadd.f32 %v683, %v711
        %v716 = vadd.f32 %v684, %v712
        %v717 = vadd.f32 %v685, %v713
        %vm718 = vcmp.ne.f32.partialorder %v622, 0.0
        %v719 = vsel %vm718, 1, 0
        %v720 = vperm.slane %v719, 0
        %vm721 = vcmp.eq.s32.totalorder %v720, 1
        %v722 = vsel %vm721, %v678, 0.0
        %v723 = vsel %vm721, %v679, 0.0
        %v724 = vsel %vm721, %v680, 0.0
        %v725 = vsel %vm721, %v681, 0.0
        %v726 = vsub.f32 %v714, %v722
        %v727 = vsub.f32 %v715, %v723
        %v728 = vsub.f32 %v716, %v724
        %v729 = vsub.f32 %v717, %v725
        %v730 = vpack.c.bf16 %v727, %v726
        %v731 = vpack.c.bf16 %v729, %v728
        %v732 = vld [vmem:[%s7] sm:$0xf]
        %v733 = vld [vmem:[%s7 + $0x4] sm:$0xf]
        %v734 = vld [vmem:[%s7 + $0x8] sm:$0xf]
        %v735 = vld [vmem:[%s7 + $0xc] sm:$0xf]
        %v736 = vld [vmem:[%s7 + $0x10] sm:$0xf]
        %v737 = vld [vmem:[%s7 + $0x14] sm:$0xf]
        %v738 = vld [vmem:[%s7 + $0x18] sm:$0xf]
        %v739 = vld [vmem:[%s7 + $0x1c] sm:$0xf]
        %v740 = vld [vmem:[%s7 + $0x20] sm:$0xf]
        %v741 = vld [vmem:[%s7 + $0x24] sm:$0xf]
        %v742 = vld [vmem:[%s7 + $0x28] sm:$0xf]
        %v743 = vld [vmem:[%s7 + $0x2c] sm:$0xf]
        %v744 = vld [vmem:[%s7 + $0x30] sm:$0xf]
        %v745 = vld [vmem:[%s7 + $0x34] sm:$0xf]
        %v746 = vld [vmem:[%s7 + $0x38] sm:$0xf]
        %v747 = vld [vmem:[%s7 + $0x3c] sm:$0xf]
        %748 = vst [vmem:[%s585] sm:$0xff] %v642
        %749 = vst [vmem:[%s585 + $0x8] sm:$0xff] %v643
        %750 = vst [vmem:[%s585 + $0x10] sm:$0xff] %v644
        %751 = vst [vmem:[%s585 + $0x18] sm:$0xff] %v645
        %752 = vst [vmem:[%s592] sm:$0xff] %v678
        %753 = vst [vmem:[%s592 + $0x8] sm:$0xff] %v679
        %754 = vst [vmem:[%s592 + $0x10] sm:$0xff] %v680
        %755 = vst [vmem:[%s592 + $0x18] sm:$0xff] %v681
        %756 = vst [vmem:[%s599] sm:$0xff] %v726
        %757 = vst [vmem:[%s599 + $0x8] sm:$0xff] %v727
        %758 = vst [vmem:[%s599 + $0x10] sm:$0xff] %v728
        %759 = vst [vmem:[%s599 + $0x18] sm:$0xff] %v729
        %v760 = vld [vmem:[%s8] sm:$0x1]
        %v762 = vperm.slane %v760, 0
        %v780 = vunpack.c.l.b16 %v732
        %v781 = vunpack.c.l.b16 %v733
        %v782 = vunpack.c.l.b16 %v734
        %v783 = vunpack.c.l.b16 %v735
        %v784 = vunpack.c.l.b16 %v736
        %v785 = vunpack.c.l.b16 %v737
        %v786 = vunpack.c.l.b16 %v738
        %v787 = vunpack.c.l.b16 %v739
        %v788 = vunpack.c.l.b16 %v740
        %v789 = vunpack.c.l.b16 %v741
        %v790 = vunpack.c.l.b16 %v742
        %v791 = vunpack.c.l.b16 %v743
        %v792 = vunpack.c.l.b16 %v744
        %v793 = vunpack.c.l.b16 %v745
        %v794 = vunpack.c.l.b16 %v746
        %v795 = vunpack.c.l.b16 %v747
        %v796 = vpack.c.b16 %v781, %v780
        %v797 = vpack.c.b16 %v783, %v782
        %v798 = vpack.c.b16 %v785, %v784
        %v799 = vpack.c.b16 %v787, %v786
        %v800 = vpack.c.b16 %v789, %v788
        %v801 = vpack.c.b16 %v791, %v790
        %v802 = vpack.c.b16 %v793, %v792
        %v803 = vpack.c.b16 %v795, %v794
        %812 = vmatpush.bf16.msra.mxu0 %v803
        %813 = vmatpush.bf16.msra.mxu0 %v802
        %814 = vmatpush.bf16.msra.mxu0 %v801
        %815 = vmatpush.bf16.msra.mxu0 %v800
        %816 = vmatpush.bf16.msra.mxu0 %v799
        %817 = vmatpush.bf16.msra.mxu0 %v798
        %818 = vmatpush.bf16.msra.mxu0 %v797
        %819 = vmatpush.bf16.msra.mxu0 %v796
        %820 = vmatmul.bf16.gmra.mxu0 %v730
        %v821 = vpop.f32.mrf.mxu0
        %v822 = vadd.f32 %v762, %v821
        %v823 = vpop.f32.mrf.mxu0
        %v824 = vadd.f32 %v762, %v823
        %825 = vmatmul.bf16.gmra.mxu0 %v731
        %v826 = vpop.f32.mrf.mxu0
        %v827 = vadd.f32 %v762, %v826
        %v828 = vpop.f32.mrf.mxu0
        %v829 = vadd.f32 %v762, %v828
        %830 = vdwg.mxu0
        %831 = vst [vmem:[%s578] sm:$0xff] %v822
        %832 = vst [vmem:[%s578 + $0x8] sm:$0xff] %v824
        %833 = vst [vmem:[%s578 + $0x10] sm:$0xff] %v827
        %834 = vst [vmem:[%s578 + $0x18] sm:$0xff] %v829
        %s835 = sand.u32 %s284, 1
        %s836 = scalar_lea.sflag [#allocation4], %s835
        %s837 = sand.u32 %s284, 1
        %s838 = smul.addr %s837, 32
        %s839 = scalar_lea.vmem [#allocation11], %s838
        %s840 = sand.u32 %s36, 1
        %s841 = scalar_lea.sflag [#allocation13], %s840
        %s842 = sand.u32 %s312, 1
        %s843 = smul.addr %s842, 32
        %s844 = scalar_lea.vmem [#allocation12], %s843
        %s845 = sand.u32 %s36, 1
        %s846 = scalar_lea.sflag [#allocation13], %s845
        %s847 = sand.u32 %s340, 1
        %s848 = smul.addr %s847, 32
        %s849 = scalar_lea.vmem [#allocation14], %s848
        %s850 = sand.u32 %s368, 1
        %s851 = scalar_lea.sflag [#allocation16], %s850
        %s852 = sand.u32 %s368, 1
        %s853 = smul.addr %s852, 32
        %s854 = scalar_lea.vmem [#allocation15], %s853
        // Predicated region
        $region77: #{tpu_custom_call.1} parent=55 // pred_check
          %p855 = pneg %p294
        $region78: #{tpu_custom_call.1} parent=55 // pred_check_branch
          %857 = sbr.rel (%p855) target = $region80
        $region79: #{tpu_custom_call.1} parent=55 // pred_region
          %s858 = smul.u32 4, %s40
          %860 = vsyncadd %s836, 0
          %s861 = smul.addr %s41, 4
          %s862 = sadd.s32 %s858, %s861
          %s863 = smul.addr %s862, 8
          %s864 = scalar_lea.hbm %s9, %s863
          %s865 = sshll.u32 %s839, 4
          %s866 = int_to_ptr.vmem [resolvable:$true] %s865
          %s867 = sshll.u32 %s864, 4
          %s868 = int_to_ptr.hbm [resolvable:$true] %s867
          %873 = dma.vmem_to_hbm [thread:$0]  %s866, 512, %s868, %s836, 128, 128, 8
        $region80: #{tpu_custom_call.1} parent=55 // pred_fallthru
          _
        // Predicated region
        $region81: #{tpu_custom_call.1} parent=55 // pred_check
          %p874 = pneg %p322
        $region82: #{tpu_custom_call.1} parent=55 // pred_check_branch
          %876 = sbr.rel (%p874) target = $region84
        $region83: #{tpu_custom_call.1} parent=55 // pred_region
          %s877 = smul.u32 4, %s40
          %879 = vsyncadd %s841, 0
          %s880 = smul.addr %s41, 4
          %s881 = sadd.s32 %s877, %s880
          %s882 = smul.addr %s881, 8
          %s883 = scalar_lea.hbm %s10, %s882
          %s884 = sshll.u32 %s844, 4
          %s885 = int_to_ptr.vmem [resolvable:$true] %s884
          %s886 = sshll.u32 %s883, 4
          %s887 = int_to_ptr.hbm [resolvable:$true] %s886
          %892 = dma.vmem_to_hbm [thread:$0]  %s885, 512, %s887, %s841, 128, 128, 8
        $region84: #{tpu_custom_call.1} parent=55 // pred_fallthru
          _
        // Predicated region
        $region85: #{tpu_custom_call.1} parent=55 // pred_check
          %p893 = pneg %p350
        $region86: #{tpu_custom_call.1} parent=55 // pred_check_branch
          %895 = sbr.rel (%p893) target = $region88
        $region87: #{tpu_custom_call.1} parent=55 // pred_region
          %s896 = smul.u32 4, %s40
          %898 = vsyncadd %s846, 0
          %s899 = smul.addr %s41, 4
          %s900 = sadd.s32 %s896, %s899
          %s901 = smul.addr %s900, 8
          %s902 = scalar_lea.hbm %s11, %s901
          %s903 = sshll.u32 %s849, 4
          %s904 = int_to_ptr.vmem [resolvable:$true] %s903
          %s905 = sshll.u32 %s902, 4
          %s906 = int_to_ptr.hbm [resolvable:$true] %s905
          %911 = dma.vmem_to_hbm [thread:$0]  %s904, 512, %s906, %s846, 128, 128, 8
        $region88: #{tpu_custom_call.1} parent=55 // pred_fallthru
          _
        // Predicated region
        $region89: #{tpu_custom_call.1} parent=55 // pred_check
          %p912 = pneg %p378
        $region90: #{tpu_custom_call.1} parent=55 // pred_check_branch
          %914 = sbr.rel (%p912) target = $region92
        $region91: #{tpu_custom_call.1} parent=55 // pred_region
          %s915 = smul.u32 4, %s40
          %917 = vsyncadd %s851, 0
          %s918 = smul.addr %s41, 4
          %s919 = sadd.s32 %s915, %s918
          %s920 = smul.addr %s919, 8
          %s921 = scalar_lea.hbm %s12, %s920
          %s922 = sshll.u32 %s854, 4
          %s923 = int_to_ptr.vmem [resolvable:$true] %s922
          %s924 = sshll.u32 %s921, 4
          %s925 = int_to_ptr.hbm [resolvable:$true] %s924
          %930 = dma.vmem_to_hbm [thread:$0]  %s923, 512, %s925, %s851, 128, 128, 8
        $region92: #{tpu_custom_call.1} parent=55 // pred_fallthru
          _
      $region56: #{tpu_custom_call.1} parent=5 // pred_fallthru
        _
      %p931 = scmp.le.s32.totalorder 2, %s31
      // Predicated region
      $region93: #{tpu_custom_call.1} parent=5 // pred_check
        %p932 = pneg %p931
      $region94: #{tpu_custom_call.1} parent=5 // pred_check_branch
        %934 = sbr.rel (%p932) target = $region96
      $region95: #{tpu_custom_call.1} parent=5 // pred_region
        %s935 = ssub.s32 %s31, 2
        // Predicated region
        $region97: #{tpu_custom_call.1} parent=95 // pred_check
          %p936 = pneg %p300
        $region98: #{tpu_custom_call.1} parent=95 // pred_check_branch
          %938 = sbr.rel (%p936) target = $region100
        $region99: #{tpu_custom_call.1} parent=95 // pred_region
          %s939 = sand.u32 %s285, 1
          %s940 = scalar_lea.sflag [#allocation4], %s939
          %s941 = sand.u32 %s285, 1
          %s942 = smul.addr %s941, 32
          %s943 = scalar_lea.vmem [#allocation11], %s942
          %945 = dma.done %s940, 512
        $region100: #{tpu_custom_call.1} parent=95 // pred_fallthru
          _
        // Predicated region
        $region101: #{tpu_custom_call.1} parent=95 // pred_check
          %p946 = pneg %p328
        $region102: #{tpu_custom_call.1} parent=95 // pred_check_branch
          %948 = sbr.rel (%p946) target = $region104
        $region103: #{tpu_custom_call.1} parent=95 // pred_region
          %s949 = sand.u32 %s37, 1
          %s950 = scalar_lea.sflag [#allocation13], %s949
          %s951 = sand.u32 %s313, 1
          %s952 = smul.addr %s951, 32
          %s953 = scalar_lea.vmem [#allocation12], %s952
          %955 = dma.done %s950, 512
        $region104: #{tpu_custom_call.1} parent=95 // pred_fallthru
          _
        // Predicated region
        $region105: #{tpu_custom_call.1} parent=95 // pred_check
          %p956 = pneg %p356
        $region106: #{tpu_custom_call.1} parent=95 // pred_check_branch
          %958 = sbr.rel (%p956) target = $region108
        $region107: #{tpu_custom_call.1} parent=95 // pred_region
          %s959 = sand.u32 %s37, 1
          %s960 = scalar_lea.sflag [#allocation13], %s959
          %s961 = sand.u32 %s341, 1
          %s962 = smul.addr %s961, 32
          %s963 = scalar_lea.vmem [#allocation14], %s962
          %965 = dma.done %s960, 512
        $region108: #{tpu_custom_call.1} parent=95 // pred_fallthru
          _
        // Predicated region
        $region109: #{tpu_custom_call.1} parent=95 // pred_check
          %p966 = pneg %p384
        $region110: #{tpu_custom_call.1} parent=95 // pred_check_branch
          %968 = sbr.rel (%p966) target = $region112
        $region111: #{tpu_custom_call.1} parent=95 // pred_region
          %s969 = sand.u32 %s369, 1
          %s970 = scalar_lea.sflag [#allocation16], %s969
          %s971 = sand.u32 %s369, 1
          %s972 = smul.addr %s971, 32
          %s973 = scalar_lea.vmem [#allocation15], %s972
          %975 = dma.done %s970, 512
        $region112: #{tpu_custom_call.1} parent=95 // pred_fallthru
          _
      $region96: #{tpu_custom_call.1} parent=5 // pred_fallthru
        _
    $region6: #{tpu_custom_call.1} parent=1 // loop_footer
      %s35 = sadd.s32 1, %s31
    $region7: #{tpu_custom_call.1} parent=1 // loop_footer_branch
      %30 = sbr.rel target = $region3
    $region8: #{tpu_custom_call.1} parent=1 // loop_exit
      _
    %976 = vsyncpa [#allocation3], 1
    %s977 = scalar_lea.sflag [#allocation3], 1
    %978 = vsyncpa %s977, 1
    %979 = vsyncpa [#allocation6], 1
    %980 = vsyncpa [#allocation9], 1
    %981 = vsyncpa [#allocation4], 1
    %s982 = scalar_lea.sflag [#allocation4], 1
    %983 = vsyncpa %s982, 1
    %984 = vsyncpa [#allocation13], 1
    %s985 = scalar_lea.sflag [#allocation13], 1
    %986 = vsyncpa %s985, 1
    %987 = vsyncpa [#allocation16], 1
    %s988 = scalar_lea.sflag [#allocation16], 1
    %989 = vsyncpa %s988, 1

</llo_original>
